<compile_context>
chip_gen: v7x
topology: tpu7x:2x2x1
jax: 0.10.0
libtpu: 0.0.40
codegen_flags: <defaults>
</compile_context>

<pallas_src>
import jax
import jax.numpy as jnp
from jax.experimental import pallas as pl
from jax.experimental.pallas import tpu as pltpu


def _round_up(x, m):
    return ((x + m - 1) // m) * m


def _linreg_kernel(x_ref, w_ref, b_ref, o_ref, acc_ref):
    # x_ref:   (tm, tk)  activation tile
    # w_ref:   (tk, tn)  pre-transposed weight tile (contraction on rows -> no transpose)
    # b_ref:   (1, tn)   bias tile for this N block
    # o_ref:   (tm, tn)  output tile
    # acc_ref: (tm, tn)  f32 accumulator, persists across the K ("arbitrary") grid axis
    k = pl.program_id(2)

    @pl.when(k == 0)
    def _():
        acc_ref[...] = jnp.zeros_like(acc_ref)

    acc_ref[...] += jnp.dot(
        x_ref[...], w_ref[...], preferred_element_type=jnp.float32
    )

    @pl.when(k == pl.num_programs(2) - 1)
    def _():
        # Bias is added exactly once, in the finalize block (not on every K step).
        o_ref[...] = (acc_ref[...] + b_ref[...].astype(jnp.float32)).astype(o_ref.dtype)


def _linreg_pallas(x, weight, bias, *, tm=256, tn=256, tk=512, compute_dtype=None):
    """Tiled Pallas matmul+bias. x: (B, in_f), weight: (out_f, in_f), bias: (out_f,)."""
    out_dtype = x.dtype
    B, in_f = x.shape
    out_f = weight.shape[0]

    # Pre-transpose the weight once in the wrapper -> kernel never issues an XLU vxpose.
    w_t = weight.T  # (in_f, out_f)
    if compute_dtype is not None:
        x = x.astype(compute_dtype)
        w_t = w_t.astype(compute_dtype)

    # Clamp tiles to the padded problem while keeping MXU/lane alignment:
    #   tm multiple of 8 (sublanes), tn / tk multiples of 128 (lanes).
    tm = min(tm, _round_up(B, 8))
    tn = min(tn, _round_up(out_f, 128))
    tk = min(tk, _round_up(in_f, 128))

    Mp = _round_up(B, tm)
    Kp = _round_up(in_f, tk)
    Np = _round_up(out_f, tn)

    # Zero-pad to tile multiples (no-op copies are skipped when already aligned).
    x_p = x if (Mp, Kp) == (B, in_f) else (
        jnp.zeros((Mp, Kp), x.dtype).at[:B, :in_f].set(x))
    w_p = w_t if (Kp, Np) == (in_f, out_f) else (
        jnp.zeros((Kp, Np), w_t.dtype).at[:in_f, :out_f].set(w_t))
    b_p = bias.reshape(1, out_f) if Np == out_f else (
        jnp.zeros((1, Np), bias.dtype).at[0, :out_f].set(bias))

    grid = (Mp // tm, Np // tn, Kp // tk)

    # Per-step VMEM footprint: double-buffered x/w/bias tiles + f32 accumulator
    # + double-buffered output tile.  Leave 2x headroom, stay well under v7x's 64 MiB.
    in_bytes = jnp.dtype(x_p.dtype).itemsize
    vmem_est = (2 * (tm * tk + tk * tn + tn) * in_bytes
                + tm * tn * 4
                + 2 * tm * tn * jnp.dtype(out_dtype).itemsize)
    vmem_limit = int(min(64 * 1024 * 1024, max(2 * vmem_est, 8 * 1024 * 1024)))

    out_p = pl.pallas_call(
        _linreg_kernel,
        out_shape=jax.ShapeDtypeStruct((Mp, Np), out_dtype),
        grid=grid,
        in_specs=[
            pl.BlockSpec((tm, tk), lambda i, j, k: (i, k)),
            pl.BlockSpec((tk, tn), lambda i, j, k: (k, j)),
            pl.BlockSpec((1, tn), lambda i, j, k: (0, j)),
        ],
        out_specs=pl.BlockSpec((tm, tn), lambda i, j, k: (i, j)),
        scratch_shapes=[pltpu.VMEM((tm, tn), jnp.float32)],
        compiler_params=pltpu.CompilerParams(
            dimension_semantics=("parallel", "parallel", "arbitrary"),
            vmem_limit_bytes=vmem_limit,
        ),
    )(x_p, w_p, b_p)

    return out_p[:B, :out_f]


def linreg_forward(x, weight, bias, *, compute_dtype=None):
    """LinReg forward: y = x @ W^T + b.

    x: (B, in_f), weight: (out_f, in_f) [PyTorch convention], bias: (out_f,).
    Tiny problems (< one MXU tile of work) run on plain XLA; everything else runs the
    tiled Pallas kernel.
    """
    B, in_f = x.shape
    out_f = weight.shape[0]
    if B * in_f * out_f < 128 * 128:
        # Sub-vreg amount of work: kernel launch + MXU latency would dominate.
        return x @ weight.T + bias[None, :]
    return _linreg_pallas(x, weight, bias, compute_dtype=compute_dtype)


if __name__ == "__main__":
    key = jax.random.PRNGKey(0)
    k_w1, k_b1, k_w2, k_b2, k_x2 = jax.random.split(key, 5)

    # --- Case 1: the lab's LinReg(input_size=1, output_size=1) with x = [1.0]. ---
    # Tiny -> dispatches to the plain-XLA path (recommended: don't use MXU/Pallas here).
    in1, out1 = 1, 1
    bound1 = 1.0 / (in1 ** 0.5)
    weight1 = jax.random.uniform(k_w1, (out1, in1), jnp.float32, -bound1, bound1)
    bias1 = jax.random.uniform(k_b1, (out1,), jnp.float32, -bound1, bound1)
    x1 = jnp.array([[1.0]], dtype=jnp.float32)
    y1 = jax.block_until_ready(linreg_forward(x1, weight1, bias1))
    y1_ref = x1 @ weight1.T + bias1[None, :]
    assert y1.shape == (1, out1)
    assert jnp.allclose(y1, y1_ref, atol=1e-6, rtol=1e-6)

    # --- Case 2: a LinReg large enough to exercise the tiled Pallas kernel. ---
    # grid = (1, 2, 2): two N blocks ("parallel", feeds both v7x TCs) x two K steps.
    batch, in_f, out_f = 256, 1024, 512
    bound2 = 1.0 / (in_f ** 0.5)
    weight2 = jax.random.uniform(k_w2, (out_f, in_f), jnp.float32, -bound2, bound2)
    bias2 = jax.random.uniform(k_b2, (out_f,), jnp.float32, -bound2, bound2)
    x2 = jax.random.normal(k_x2, (batch, in_f), jnp.float32)

    y2 = jax.block_until_ready(linreg_forward(x2, weight2, bias2))
    y2_ref = x2 @ weight2.T + bias2[None, :]
    assert y2.shape == (batch, out_f)
    # Tolerance covers possible MXU precision differences between the Pallas dot and
    # XLA's default f32 matmul path over K=1024.
    assert jnp.allclose(y2, y2_ref, atol=2e-2, rtol=2e-2)

    print("KERNEL_OK")
</pallas_src>

<mosaic_0001>
module attributes {stable_mosaic.version = 11 : i64} {
  func.func @_linreg_kernel(%arg0: i32, %arg1: i32, %arg2: i32, %arg3: memref<256x512xf32, #tpu.memory_space<vmem>>, %arg4: memref<512x256xf32, #tpu.memory_space<vmem>>, %arg5: memref<1x256xf32, #tpu.memory_space<vmem>>, %arg6: memref<256x256xf32, #tpu.memory_space<vmem>>, %arg7: memref<256x256xf32, #tpu.memory_space<vmem>>) attributes {dimension_semantics = [#tpu.dimension_semantics<parallel>, #tpu.dimension_semantics<parallel>, #tpu.dimension_semantics<arbitrary>], iteration_bounds = array<i64: 1, 2, 2>, scalar_prefetch = 0 : i64, scratch_operands = 1 : i64, tpu.core_type = #tpu.core_type<tc>, window_params = [{transform_indices = @transform_0, window_bounds = array<i64: 256, 512>}, {transform_indices = @transform_1, window_bounds = array<i64: 512, 256>}, {transform_indices = @transform_2, window_bounds = array<i64: 1, 256>}, {transform_indices = @transform_3, window_bounds = array<i64: 256, 256>}]} {
    %c0_i32 = arith.constant 0 : i32
    %0 = arith.cmpi eq, %arg2, %c0_i32 : i32
    %1 = arith.extui %0 : i1 to i32
    %c0_i32_0 = arith.constant 0 : i32
    %2 = arith.cmpi ne, %1, %c0_i32_0 : i32
    scf.if %2 {
      %cst_9 = arith.constant 0.000000e+00 : f32
      %12 = vector.broadcast %cst_9 : f32 to vector<256x256xf32>
      %c0_10 = arith.constant 0 : index
      %c0_11 = arith.constant 0 : index
      %13 = vector.load %arg7[%c0_10, %c0_11] : memref<256x256xf32, #tpu.memory_space<vmem>>, vector<256x256xf32>
      tpu.vector_store %arg7[%c0_10, %c0_11], %12 {strides = array<i32>} : memref<256x256xf32, #tpu.memory_space<vmem>>, vector<256x256xf32>,
    } else {
    }
    %c0 = arith.constant 0 : index
    %c0_1 = arith.constant 0 : index
    %3 = vector.load %arg7[%c0, %c0_1] : memref<256x256xf32, #tpu.memory_space<vmem>>, vector<256x256xf32>
    %c0_2 = arith.constant 0 : index
    %c0_3 = arith.constant 0 : index
    %4 = vector.load %arg3[%c0_2, %c0_3] : memref<256x512xf32, #tpu.memory_space<vmem>>, vector<256x512xf32>
    %c0_4 = arith.constant 0 : index
    %c0_5 = arith.constant 0 : index
    %5 = vector.load %arg4[%c0_4, %c0_5] : memref<512x256xf32, #tpu.memory_space<vmem>>, vector<512x256xf32>
    %cst = arith.constant dense<0.000000e+00> : vector<256x256xf32>
    %6 = tpu.matmul %4, %5, %cst {dimension_numbers = #tpu.dot_dimension_numbers<[1], [0], [0], [1], [0, 0, 1, 1], [], []>} : vector<256x512xf32>, vector<512x256xf32>, vector<256x256xf32> -> vector<256x256xf32>
    %7 = arith.addf %3, %6 : vector<256x256xf32>
    %c0_6 = arith.constant 0 : index
    %c0_7 = arith.constant 0 : index
    %8 = vector.load %arg7[%c0_6, %c0_7] : memref<256x256xf32, #tpu.memory_space<vmem>>, vector<256x256xf32>
    tpu.vector_store %arg7[%c0_6, %c0_7], %7 {strides = array<i32>} : memref<256x256xf32, #tpu.memory_space<vmem>>, vector<256x256xf32>,
    %c1_i32 = arith.constant 1 : i32
    %9 = arith.cmpi eq, %arg2, %c1_i32 : i32
    %10 = arith.extui %9 : i1 to i32
    %c0_i32_8 = arith.constant 0 : i32
    %11 = arith.cmpi ne, %10, %c0_i32_8 : i32
    scf.if %11 {
      %c0_9 = arith.constant 0 : index
      %c0_10 = arith.constant 0 : index
      %12 = vector.load %arg7[%c0_9, %c0_10] : memref<256x256xf32, #tpu.memory_space<vmem>>, vector<256x256xf32>
      %c0_11 = arith.constant 0 : index
      %c0_12 = arith.constant 0 : index
      %13 = vector.load %arg5[%c0_11, %c0_12] : memref<1x256xf32, #tpu.memory_space<vmem>>, vector<1x256xf32>
      %14 = vector.broadcast %13 : vector<1x256xf32> to vector<256x256xf32>
      %15 = arith.addf %12, %14 : vector<256x256xf32>
      %c0_13 = arith.constant 0 : index
      %c0_14 = arith.constant 0 : index
      %16 = vector.load %arg6[%c0_13, %c0_14] : memref<256x256xf32, #tpu.memory_space<vmem>>, vector<256x256xf32>
      tpu.vector_store %arg6[%c0_13, %c0_14], %15 {strides = array<i32>} : memref<256x256xf32, #tpu.memory_space<vmem>>, vector<256x256xf32>,
    } else {
    }
    return
  }
  func.func @transform_0(%arg0: i32, %arg1: i32, %arg2: i32) -> (i32, i32) {
    %c0_i32 = arith.constant 0 : i32
    return %arg0, %arg2 : i32, i32
  }
  func.func @transform_1(%arg0: i32, %arg1: i32, %arg2: i32) -> (i32, i32) {
    %c0_i32 = arith.constant 0 : i32
    return %arg2, %arg1 : i32, i32
  }
  func.func @transform_2(%arg0: i32, %arg1: i32, %arg2: i32) -> (i32, i32) {
    %c0_i32 = arith.constant 0 : i32
    %c0_i32_0 = arith.constant 0 : i32
    return %c0_i32, %arg1 : i32, i32
  }
  func.func @transform_3(%arg0: i32, %arg1: i32, %arg2: i32) -> (i32, i32) {
    %c0_i32 = arith.constant 0 : i32
    return %arg0, %arg1 : i32, i32
  }
}

</mosaic_0001>

<llo_original>
// kernel: tpu_custom_call.1
$region0: #{tpu_custom_call.1}
  #allocation0 [shape = 'u32[]', space=smem, size = 0x4, offset = 0x4, fixed_abs, tag = 'smem constant byte address 0x4 - core index']
  #allocation1 [shape = 'u32[144,128]{1,0:T(1,128)}', space=vmem, size = 0x12000, scoped, tag = 'internal scratch']
  #allocation2 [shape = 'f32[256,256]{1,0:T(8,128)}', space=vmem, size = 0x40000, scoped, tag = 'scratch operand']
  %s0 = inlined_call_operand.hbm [shape: f32[256,1024], index: 0, kind: input, shape index: {}]
  %s1 = inlined_call_operand.hbm [shape: f32[1024,512], index: 1, kind: input, shape index: {}]
  %s2 = inlined_call_operand.hbm [shape: f32[1,512], index: 2, kind: input, shape index: {}]
  %s3 = inlined_call_operand.hbm [shape: f32[256,512], index: 3, kind: output, shape index: {}]
  %s4 = sld [smem:[#allocation0]]
  $region65: #{tpu_custom_call.1} parent=0
    _
  %s6 = ssub.s32 1, %s4
  %s7 = scalar_select 0, %s6, %s4
  $region1: #{tpu_custom_call.1} parent=0
    #allocation3 [shape = 'u8[1048576]{0}', space=vmem, size = 0x100000, scoped, tag = 'input window, operand 0']
    #allocation4 [shape = 's32[2]{0}', space=sflag, size = 0x8, scoped, tag = 'scoped memory for tpu_custom_call.1']
    #allocation5 [shape = 's32[2]{0}', space=sflag, size = 0x8, scoped, tag = 'scoped memory for tpu_custom_call.1']
    #allocation6 [shape = 'u8[1048576]{0}', space=vmem, size = 0x100000, scoped, tag = 'input window, operand 1']
    #allocation7 [shape = 's32[2]{0}', space=sflag, size = 0x8, scoped, tag = 'scoped memory for tpu_custom_call.1']
    #allocation8 [shape = 'u8[2048]{0}', space=vmem, size = 0x800, scoped, tag = 'input window, operand 2']
    #allocation9 [shape = 'u8[524288]{0}', space=vmem, size = 0x80000, scoped, tag = 'output window, operand 0']
    %8 = vsyncpa [#allocation4], 0
    %s9 = scalar_lea.sflag [#allocation4], 1
    %10 = vsyncpa %s9, 0
    %11 = vsyncpa [#allocation7], 0
    %s12 = scalar_lea.sflag [#allocation7], 1
    %13 = vsyncpa %s12, 0
    %14 = vsyncpa [#allocation5], 0
    %s15 = scalar_lea.sflag [#allocation5], 1
    %16 = vsyncpa %s15, 0
    loop: start=0, step=1, limit=6
    $region2: #{tpu_custom_call.1} parent=1 // loop_pre_header
      _
    $region3: #{tpu_custom_call.1} parent=1 // loop_header
      %s18 = sphi 0, %s22
      %p19 = scmp.ge.s32.totalorder %s18, 6
      %s25 = sphi 0, %s44
      %s26 = sphi 0, %s40
      %s27 = sphi 0, %s36
      %s28 = sphi 0, %s25
      %s29 = sphi 0, %s26
      %s30 = sphi 0, %s27
      %s31 = sphi 0, %s28
      %s32 = sphi 0, %s29
      %s33 = sphi 0, %s30
      %s49 = sphi 0, %s51
      %s52 = sphi 0, %s49
      %s53 = sphi 0, %s52
      %s69 = sphi 0, %s53
      %s77 = sphi 0, %s79
      %s80 = sphi 0, %s77
      %s81 = sphi 0, %s80
      %s97 = sphi 0, %s81
      %s103 = sphi 0, %s105
      %s106 = sphi 0, %s103
      %s107 = sphi 0, %s106
      %s123 = sphi 0, %s107
      %s131 = sphi 0, %s133
      %s134 = sphi 0, %s131
      %s135 = sphi 0, %s134
      %s151 = sphi 0, %s135
    $region4: #{tpu_custom_call.1} parent=1 // loop_header_branch
      %21 = sbr.rel (%p19) target = $region8
    $region5: #{tpu_custom_call.1} parent=1 // loop_body
      %s23 = ssub.s32 %s18, 1
      %s24 = ssub.s32 %s18, 2
      %s34 = sadd.s32 1, %s27
      %p35 = scmp.ge.s32.totalorder %s34, 2
      %s36 = scalar_select %p35, 0, %s34
      %s37 = sadd.s32 1, %s26
      %s38 = scalar_select %p35, %s37, %s26
      %p39 = scmp.ge.s32.totalorder %s38, 2
      %s40 = scalar_select %p39, 0, %s38
      %s41 = sadd.s32 1, %s25
      %s42 = scalar_select %p39, %s41, %s25
      %p43 = scmp.ge.s32.totalorder %s42, 1
      %s44 = scalar_select %p43, 0, %s42
      %s45 = ssub.s32 %s25, %s44
      %s46 = ssub.s32 %s27, %s36
      %s47 = sor.u32 %s45, %s46
      %p48 = scmp.eq.s32.totalorder %s47, 0
      %s50 = sadd.s32 %s49, 1
      %s51 = scalar_select %p48, %s49, %s50
      %p54 = pneg %p48
      %p55 = scmp.eq.s32.totalorder %s18, 3
      %p56 = por %p54, %p55
      %p57 = scmp.ne.s32.totalorder %s49, %s52
      %p58 = scmp.eq.s32.totalorder %s18, 0
      %p59 = por %p57, %p58
      %p60 = scmp.ne.s32.totalorder %s49, %s52
      %p61 = scmp.eq.s32.totalorder %s23, 3
      %p62 = por %p60, %p61
      %p63 = scmp.ne.s32.totalorder %s52, %s53
      %p64 = scmp.eq.s32.totalorder %s23, 0
      %p65 = por %p63, %p64
      %p66 = scmp.ne.s32.totalorder %s52, %s53
      %p67 = scmp.eq.s32.totalorder %s24, 3
      %p68 = por %p66, %p67
      %p70 = scmp.ne.s32.totalorder %s53, %s69
      %p71 = scmp.eq.s32.totalorder %s24, 0
      %p72 = por %p70, %p71
      %s73 = ssub.s32 %s27, %s36
      %s74 = ssub.s32 %s26, %s40
      %s75 = sor.u32 %s73, %s74
      %p76 = scmp.eq.s32.totalorder %s75, 0
      %s78 = sadd.s32 %s77, 1
      %s79 = scalar_select %p76, %s77, %s78
      %p82 = pneg %p76
      %p83 = scmp.eq.s32.totalorder %s18, 3
      %p84 = por %p82, %p83
      %p85 = scmp.ne.s32.totalorder %s77, %s80
      %p86 = scmp.eq.s32.totalorder %s18, 0
      %p87 = por %p85, %p86
      %p88 = scmp.ne.s32.totalorder %s77, %s80
      %p89 = scmp.eq.s32.totalorder %s23, 3
      %p90 = por %p88, %p89
      %p91 = scmp.ne.s32.totalorder %s80, %s81
      %p92 = scmp.eq.s32.totalorder %s23, 0
      %p93 = por %p91, %p92
      %p94 = scmp.ne.s32.totalorder %s80, %s81
      %p95 = scmp.eq.s32.totalorder %s24, 3
      %p96 = por %p94, %p95
      %p98 = scmp.ne.s32.totalorder %s81, %s97
      %p99 = scmp.eq.s32.totalorder %s24, 0
      %p100 = por %p98, %p99
      %s101 = ssub.s32 %s26, %s40
      %p102 = scmp.eq.s32.totalorder %s101, 0
      %s104 = sadd.s32 %s103, 1
      %s105 = scalar_select %p102, %s103, %s104
      %p108 = pneg %p102
      %p109 = scmp.eq.s32.totalorder %s18, 3
      %p110 = por %p108, %p109
      %p111 = scmp.ne.s32.totalorder %s103, %s106
      %p112 = scmp.eq.s32.totalorder %s18, 0
      %p113 = por %p111, %p112
      %p114 = scmp.ne.s32.totalorder %s103, %s106
      %p115 = scmp.eq.s32.totalorder %s23, 3
      %p116 = por %p114, %p115
      %p117 = scmp.ne.s32.totalorder %s106, %s107
      %p118 = scmp.eq.s32.totalorder %s23, 0
      %p119 = por %p117, %p118
      %p120 = scmp.ne.s32.totalorder %s106, %s107
      %p121 = scmp.eq.s32.totalorder %s24, 3
      %p122 = por %p120, %p121
      %p124 = scmp.ne.s32.totalorder %s107, %s123
      %p125 = scmp.eq.s32.totalorder %s24, 0
      %p126 = por %p124, %p125
      %s127 = ssub.s32 %s25, %s44
      %s128 = ssub.s32 %s26, %s40
      %s129 = sor.u32 %s127, %s128
      %p130 = scmp.eq.s32.totalorder %s129, 0
      %s132 = sadd.s32 %s131, 1
      %s133 = scalar_select %p130, %s131, %s132
      %p136 = pneg %p130
      %p137 = scmp.eq.s32.totalorder %s18, 3
      %p138 = por %p136, %p137
      %p139 = scmp.ne.s32.totalorder %s131, %s134
      %p140 = scmp.eq.s32.totalorder %s18, 0
      %p141 = por %p139, %p140
      %p142 = scmp.ne.s32.totalorder %s131, %s134
      %p143 = scmp.eq.s32.totalorder %s23, 3
      %p144 = por %p142, %p143
      %p145 = scmp.ne.s32.totalorder %s134, %s135
      %p146 = scmp.eq.s32.totalorder %s23, 0
      %p147 = por %p145, %p146
      %p148 = scmp.ne.s32.totalorder %s134, %s135
      %p149 = scmp.eq.s32.totalorder %s24, 3
      %p150 = por %p148, %p149
      %p152 = scmp.ne.s32.totalorder %s135, %s151
      %p153 = scmp.eq.s32.totalorder %s24, 0
      %p154 = por %p152, %p153
      %p155 = scmp.le.s32.totalorder 1, %s18
      %p156 = scmp.lt.s32.totalorder %s18, 5
      %p157 = pnand %p155, %p156
      %p158 = pneg %p157
      // Predicated region
      $region9: #{tpu_custom_call.1} parent=5 // pred_check
        _
      $region10: #{tpu_custom_call.1} parent=5 // pred_check_branch
        %160 = sbr.rel (%p157) target = $region12
      $region11: #{tpu_custom_call.1} parent=5 // pred_region
        %s161 = ssub.s32 %s18, 1
      $region12: #{tpu_custom_call.1} parent=5 // pred_fallthru
        _
      %p162 = scmp.lt.s32.totalorder %s18, 4
      // Predicated region
      $region13: #{tpu_custom_call.1} parent=5 // pred_check
        %p163 = pneg %p162
      $region14: #{tpu_custom_call.1} parent=5 // pred_check_branch
        %165 = sbr.rel (%p163) target = $region16
      $region15: #{tpu_custom_call.1} parent=5 // pred_region
        // Predicated region
        $region17: #{tpu_custom_call.1} parent=15 // pred_check
          %p166 = pneg %p59
        $region18: #{tpu_custom_call.1} parent=15 // pred_check_branch
          %168 = sbr.rel (%p166) target = $region20
        $region19: #{tpu_custom_call.1} parent=15 // pred_region
          %s169 = sand.u32 %s49, 1
          %s170 = scalar_lea.sflag [#allocation4], %s169
          %s171 = sand.u32 %s49, 1
          %s172 = smul.addr %s171, 1024
          %s173 = scalar_lea.vmem [#allocation3], %s172
          %s174 = smul.u32 32, %s25
          %s175 = smul.u32 4, %s27
          %s177 = ssub.s32 16384, 16384
          %178 = vsyncadd %s170, %s177
          %s179 = smul.addr %s174, 8
          %s180 = sadd.s32 %s175, %s179
          %s181 = smul.addr %s180, 128
          %s182 = scalar_lea.hbm %s0, %s181
          %s183 = sshll.u32 %s173, 4
          %s184 = int_to_ptr.vmem [resolvable:$true] %s183
          %189 = dma.hbm_to_vmem [thread:$0]  %s182, 16384, %s184, %s170, 1024, 512, 32
        $region20: #{tpu_custom_call.1} parent=15 // pred_fallthru
          _
        // Predicated region
        $region21: #{tpu_custom_call.1} parent=15 // pred_check
          %p190 = pneg %p87
        $region22: #{tpu_custom_call.1} parent=15 // pred_check_branch
          %192 = sbr.rel (%p190) target = $region24
        $region23: #{tpu_custom_call.1} parent=15 // pred_region
          %s193 = sand.u32 %s18, 1
          %s194 = scalar_lea.sflag [#allocation7], %s193
          %s195 = sand.u32 %s77, 1
          %s196 = smul.addr %s195, 1024
          %s197 = scalar_lea.vmem [#allocation6], %s196
          %s198 = smul.u32 64, %s27
          %s199 = smul.u32 2, %s26
          %s201 = ssub.s32 16384, 16384
          %202 = vsyncadd %s194, %s201
          %s203 = smul.addr %s198, 4
          %s204 = sadd.s32 %s199, %s203
          %s205 = smul.addr %s204, 128
          %s206 = scalar_lea.hbm %s1, %s205
          %s207 = sshll.u32 %s197, 4
          %s208 = int_to_ptr.vmem [resolvable:$true] %s207
          %213 = dma.hbm_to_vmem [thread:$0]  %s206, 16384, %s208, %s194, 512, 256, 16
        $region24: #{tpu_custom_call.1} parent=15 // pred_fallthru
          _
        // Predicated region
        $region25: #{tpu_custom_call.1} parent=15 // pred_check
          %p214 = pneg %p113
        $region26: #{tpu_custom_call.1} parent=15 // pred_check_branch
          %216 = sbr.rel (%p214) target = $region28
        $region27: #{tpu_custom_call.1} parent=15 // pred_region
          %s217 = sand.u32 %s18, 1
          %s218 = scalar_lea.sflag [#allocation7], %s217
          %s219 = sand.u32 %s103, 1
          %s220 = smul.addr %s219, 2
          %s221 = scalar_lea.vmem [#allocation8], %s220
          %s222 = smul.u32 2, %s26
          %s224 = ssub.s32 32, 32
          %225 = vsyncadd %s218, %s224
          %s226 = smul.addr %s222, 16
          %s227 = scalar_lea.hbm %s2, %s226
          %s229 = sshll.u32 %s221, 4
          %s230 = int_to_ptr.vmem [resolvable:$true] %s229
          %232 = dma.hbm_to_vmem [thread:$0]  %s227, 32, %s230, %s218
        $region28: #{tpu_custom_call.1} parent=15 // pred_fallthru
          _
      $region16: #{tpu_custom_call.1} parent=5 // pred_fallthru
        _
      %p233 = scmp.le.s32.totalorder 1, %s18
      %p234 = scmp.lt.s32.totalorder %s18, 5
      %p235 = pnand %p233, %p234
      %p236 = pneg %p235
      // Predicated region
      $region29: #{tpu_custom_call.1} parent=5 // pred_check
        _
      $region30: #{tpu_custom_call.1} parent=5 // pred_check_branch
        %238 = sbr.rel (%p235) target = $region32
      $region31: #{tpu_custom_call.1} parent=5 // pred_region
        %s239 = ssub.s32 %s18, 1
        %s240 = sand.u32 %s52, 1
        %s241 = scalar_lea.sflag [#allocation4], %s240
        %s242 = sand.u32 %s52, 1
        %s243 = smul.addr %s242, 1024
        %s244 = scalar_lea.vmem [#allocation3], %s243
        // Predicated region
        $region33: #{tpu_custom_call.1} parent=31 // pred_check
          %p245 = pneg %p65
        $region34: #{tpu_custom_call.1} parent=31 // pred_check_branch
          %247 = sbr.rel (%p245) target = $region36
        $region35: #{tpu_custom_call.1} parent=31 // pred_region
          %248 = dma.done %s241, 16384
        $region36: #{tpu_custom_call.1} parent=31 // pred_fallthru
          _
        %s249 = sand.u32 %s23, 1
        %s250 = scalar_lea.sflag [#allocation7], %s249
        %s251 = sand.u32 %s80, 1
        %s252 = smul.addr %s251, 1024
        %s253 = scalar_lea.vmem [#allocation6], %s252
        // Predicated region
        $region37: #{tpu_custom_call.1} parent=31 // pred_check
          %p254 = pneg %p93
        $region38: #{tpu_custom_call.1} parent=31 // pred_check_branch
          %256 = sbr.rel (%p254) target = $region40
        $region39: #{tpu_custom_call.1} parent=31 // pred_region
          %257 = dma.done %s250, 16384
        $region40: #{tpu_custom_call.1} parent=31 // pred_fallthru
          _
        %s258 = sand.u32 %s23, 1
        %s259 = scalar_lea.sflag [#allocation7], %s258
        %s260 = sand.u32 %s106, 1
        %s261 = smul.addr %s260, 2
        %s262 = scalar_lea.vmem [#allocation8], %s261
        // Predicated region
        $region41: #{tpu_custom_call.1} parent=31 // pred_check
          %p263 = pneg %p119
        $region42: #{tpu_custom_call.1} parent=31 // pred_check_branch
          %265 = sbr.rel (%p263) target = $region44
        $region43: #{tpu_custom_call.1} parent=31 // pred_region
          %266 = dma.done %s259, 32
        $region44: #{tpu_custom_call.1} parent=31 // pred_fallthru
          _
        %s267 = sand.u32 %s52, 1
        %s268 = scalar_lea.sflag [#allocation4], %s267
        %s269 = sand.u32 %s52, 1
        %s270 = smul.addr %s269, 1024
        %s271 = scalar_lea.vmem [#allocation3], %s270
        %p272 = pneg %p65
        %p273 = pneg %p62
        %s274 = sand.u32 %s23, 1
        %s275 = scalar_lea.sflag [#allocation7], %s274
        %s276 = sand.u32 %s80, 1
        %s277 = smul.addr %s276, 1024
        %s278 = scalar_lea.vmem [#allocation6], %s277
        %p279 = pneg %p93
        %p280 = pneg %p90
        %s281 = sand.u32 %s23, 1
        %s282 = scalar_lea.sflag [#allocation7], %s281
        %s283 = sand.u32 %s106, 1
        %s284 = smul.addr %s283, 2
        %s285 = scalar_lea.vmem [#allocation8], %s284
        %p286 = pneg %p119
        %p287 = pneg %p116
        %p288 = pneg %p147
        %p289 = pneg %p144
        %s290 = sand.u32 %s134, 1
        %s291 = scalar_lea.sflag [#allocation5], %s290
        %s292 = sand.u32 %s134, 1
        %s293 = smul.addr %s292, 512
        %s294 = scalar_lea.vmem [#allocation9], %s293
        %s295 = smul.u32 32, %s28
        %s296 = smul.u32 4, %s30
        %s297 = smul.u32 64, %s30
        %s298 = smul.u32 2, %s29
        %s299 = smul.u32 2, %s29
        %s300 = smul.u32 32, %s28
        %s301 = smul.u32 2, %s29
        %p302 = scmp.eq.s32.totalorder %s30, 0
        // Predicated region
        $region45: #{tpu_custom_call.1} parent=31 // pred_check
          %p303 = pneg %p302
        $region46: #{tpu_custom_call.1} parent=31 // pred_check_branch
          %305 = sbr.rel (%p303) target = $region48
        $region47: #{tpu_custom_call.1} parent=31 // pred_region
          %306 = vst [vmem:[#allocation2] sm:$0xff] 0.0
          %307 = vst [vmem:[#allocation2 + $0x8] sm:$0xff] 0.0
          %308 = vst [vmem:[#allocation2 + $0x10] sm:$0xff] 0.0
          %309 = vst [vmem:[#allocation2 + $0x18] sm:$0xff] 0.0
          %310 = vst [vmem:[#allocation2 + $0x20] sm:$0xff] 0.0
          %311 = vst [vmem:[#allocation2 + $0x28] sm:$0xff] 0.0
          %312 = vst [vmem:[#allocation2 + $0x30] sm:$0xff] 0.0
          %313 = vst [vmem:[#allocation2 + $0x38] sm:$0xff] 0.0
          %314 = vst [vmem:[#allocation2 + $0x40] sm:$0xff] 0.0
          %315 = vst [vmem:[#allocation2 + $0x48] sm:$0xff] 0.0
          %316 = vst [vmem:[#allocation2 + $0x50] sm:$0xff] 0.0
          %317 = vst [vmem:[#allocation2 + $0x58] sm:$0xff] 0.0
          %318 = vst [vmem:[#allocation2 + $0x60] sm:$0xff] 0.0
          %319 = vst [vmem:[#allocation2 + $0x68] sm:$0xff] 0.0
          %320 = vst [vmem:[#allocation2 + $0x70] sm:$0xff] 0.0
          %321 = vst [vmem:[#allocation2 + $0x78] sm:$0xff] 0.0
          %322 = vst [vmem:[#allocation2 + $0x80] sm:$0xff] 0.0
          %323 = vst [vmem:[#allocation2 + $0x88] sm:$0xff] 0.0
          %324 = vst [vmem:[#allocation2 + $0x90] sm:$0xff] 0.0
          %325 = vst [vmem:[#allocation2 + $0x98] sm:$0xff] 0.0
          %326 = vst [vmem:[#allocation2 + $0xa0] sm:$0xff] 0.0
          %327 = vst [vmem:[#allocation2 + $0xa8] sm:$0xff] 0.0
          %328 = vst [vmem:[#allocation2 + $0xb0] sm:$0xff] 0.0
          %329 = vst [vmem:[#allocation2 + $0xb8] sm:$0xff] 0.0
          %330 = vst [vmem:[#allocation2 + $0xc0] sm:$0xff] 0.0
          %331 = vst [vmem:[#allocation2 + $0xc8] sm:$0xff] 0.0
          %332 = vst [vmem:[#allocation2 + $0xd0] sm:$0xff] 0.0
          %333 = vst [vmem:[#allocation2 + $0xd8] sm:$0xff] 0.0
          %334 = vst [vmem:[#allocation2 + $0xe0] sm:$0xff] 0.0
          %335 = vst [vmem:[#allocation2 + $0xe8] sm:$0xff] 0.0
          %336 = vst [vmem:[#allocation2 + $0xf0] sm:$0xff] 0.0
          %337 = vst [vmem:[#allocation2 + $0xf8] sm:$0xff] 0.0
          %338 = vst [vmem:[#allocation2 + $0x100] sm:$0xff] 0.0
          %339 = vst [vmem:[#allocation2 + $0x108] sm:$0xff] 0.0
          %340 = vst [vmem:[#allocation2 + $0x110] sm:$0xff] 0.0
          %341 = vst [vmem:[#allocation2 + $0x118] sm:$0xff] 0.0
          %342 = vst [vmem:[#allocation2 + $0x120] sm:$0xff] 0.0
          %343 = vst [vmem:[#allocation2 + $0x128] sm:$0xff] 0.0
          %344 = vst [vmem:[#allocation2 + $0x130] sm:$0xff] 0.0
          %345 = vst [vmem:[#allocation2 + $0x138] sm:$0xff] 0.0
          %346 = vst [vmem:[#allocation2 + $0x140] sm:$0xff] 0.0
          %347 = vst [vmem:[#allocation2 + $0x148] sm:$0xff] 0.0
          %348 = vst [vmem:[#allocation2 + $0x150] sm:$0xff] 0.0
          %349 = vst [vmem:[#allocation2 + $0x158] sm:$0xff] 0.0
          %350 = vst [vmem:[#allocation2 + $0x160] sm:$0xff] 0.0
          %351 = vst [vmem:[#allocation2 + $0x168] sm:$0xff] 0.0
          %352 = vst [vmem:[#allocation2 + $0x170] sm:$0xff] 0.0
          %353 = vst [vmem:[#allocation2 + $0x178] sm:$0xff] 0.0
          %354 = vst [vmem:[#allocation2 + $0x180] sm:$0xff] 0.0
          %355 = vst [vmem:[#allocation2 + $0x188] sm:$0xff] 0.0
          %356 = vst [vmem:[#allocation2 + $0x190] sm:$0xff] 0.0
          %357 = vst [vmem:[#allocation2 + $0x198] sm:$0xff] 0.0
          %358 = vst [vmem:[#allocation2 + $0x1a0] sm:$0xff] 0.0
          %359 = vst [vmem:[#allocation2 + $0x1a8] sm:$0xff] 0.0
          %360 = vst [vmem:[#allocation2 + $0x1b0] sm:$0xff] 0.0
          %361 = vst [vmem:[#allocation2 + $0x1b8] sm:$0xff] 0.0
          %362 = vst [vmem:[#allocation2 + $0x1c0] sm:$0xff] 0.0
          %363 = vst [vmem:[#allocation2 + $0x1c8] sm:$0xff] 0.0
          %364 = vst [vmem:[#allocation2 + $0x1d0] sm:$0xff] 0.0
          %365 = vst [vmem:[#allocation2 + $0x1d8] sm:$0xff] 0.0
          %366 = vst [vmem:[#allocation2 + $0x1e0] sm:$0xff] 0.0
          %367 = vst [vmem:[#allocation2 + $0x1e8] sm:$0xff] 0.0
          %368 = vst [vmem:[#allocation2 + $0x1f0] sm:$0xff] 0.0
          %369 = vst [vmem:[#allocation2 + $0x1f8] sm:$0xff] 0.0
        $region48: #{tpu_custom_call.1} parent=31 // pred_fallthru
          _
        %v370 = vld [vmem:[#allocation2] sm:$0xff]
        %v371 = vld [vmem:[#allocation2 + $0x8] sm:$0xff]
        %v372 = vld [vmem:[#allocation2 + $0x10] sm:$0xff]
        %v373 = vld [vmem:[#allocation2 + $0x18] sm:$0xff]
        %v374 = vld [vmem:[#allocation2 + $0x20] sm:$0xff]
        %v375 = vld [vmem:[#allocation2 + $0x28] sm:$0xff]
        %v376 = vld [vmem:[#allocation2 + $0x30] sm:$0xff]
        %v377 = vld [vmem:[#allocation2 + $0x38] sm:$0xff]
        %v378 = vld [vmem:[#allocation2 + $0x40] sm:$0xff]
        %v379 = vld [vmem:[#allocation2 + $0x48] sm:$0xff]
        %v380 = vld [vmem:[#allocation2 + $0x50] sm:$0xff]
        %v381 = vld [vmem:[#allocation2 + $0x58] sm:$0xff]
        %v382 = vld [vmem:[#allocation2 + $0x60] sm:$0xff]
        %v383 = vld [vmem:[#allocation2 + $0x68] sm:$0xff]
        %v384 = vld [vmem:[#allocation2 + $0x70] sm:$0xff]
        %v385 = vld [vmem:[#allocation2 + $0x78] sm:$0xff]
        %v386 = vld [vmem:[#allocation2 + $0x80] sm:$0xff]
        %v387 = vld [vmem:[#allocation2 + $0x88] sm:$0xff]
        %v388 = vld [vmem:[#allocation2 + $0x90] sm:$0xff]
        %v389 = vld [vmem:[#allocation2 + $0x98] sm:$0xff]
        %v390 = vld [vmem:[#allocation2 + $0xa0] sm:$0xff]
        %v391 = vld [vmem:[#allocation2 + $0xa8] sm:$0xff]
        %v392 = vld [vmem:[#allocation2 + $0xb0] sm:$0xff]
        %v393 = vld [vmem:[#allocation2 + $0xb8] sm:$0xff]
        %v394 = vld [vmem:[#allocation2 + $0xc0] sm:$0xff]
        %v395 = vld [vmem:[#allocation2 + $0xc8] sm:$0xff]
        %v396 = vld [vmem:[#allocation2 + $0xd0] sm:$0xff]
        %v397 = vld [vmem:[#allocation2 + $0xd8] sm:$0xff]
        %v398 = vld [vmem:[#allocation2 + $0xe0] sm:$0xff]
        %v399 = vld [vmem:[#allocation2 + $0xe8] sm:$0xff]
        %v400 = vld [vmem:[#allocation2 + $0xf0] sm:$0xff]
        %v401 = vld [vmem:[#allocation2 + $0xf8] sm:$0xff]
        %v402 = vld [vmem:[#allocation2 + $0x100] sm:$0xff]
        %v403 = vld [vmem:[#allocation2 + $0x108] sm:$0xff]
        %v404 = vld [vmem:[#allocation2 + $0x110] sm:$0xff]
        %v405 = vld [vmem:[#allocation2 + $0x118] sm:$0xff]
        %v406 = vld [vmem:[#allocation2 + $0x120] sm:$0xff]
        %v407 = vld [vmem:[#allocation2 + $0x128] sm:$0xff]
        %v408 = vld [vmem:[#allocation2 + $0x130] sm:$0xff]
        %v409 = vld [vmem:[#allocation2 + $0x138] sm:$0xff]
        %v410 = vld [vmem:[#allocation2 + $0x140] sm:$0xff]
        %v411 = vld [vmem:[#allocation2 + $0x148] sm:$0xff]
        %v412 = vld [vmem:[#allocation2 + $0x150] sm:$0xff]
        %v413 = vld [vmem:[#allocation2 + $0x158] sm:$0xff]
        %v414 = vld [vmem:[#allocation2 + $0x160] sm:$0xff]
        %v415 = vld [vmem:[#allocation2 + $0x168] sm:$0xff]
        %v416 = vld [vmem:[#allocation2 + $0x170] sm:$0xff]
        %v417 = vld [vmem:[#allocation2 + $0x178] sm:$0xff]
        %v418 = vld [vmem:[#allocation2 + $0x180] sm:$0xff]
        %v419 = vld [vmem:[#allocation2 + $0x188] sm:$0xff]
        %v420 = vld [vmem:[#allocation2 + $0x190] sm:$0xff]
        %v421 = vld [vmem:[#allocation2 + $0x198] sm:$0xff]
        %v422 = vld [vmem:[#allocation2 + $0x1a0] sm:$0xff]
        %v423 = vld [vmem:[#allocation2 + $0x1a8] sm:$0xff]
        %v424 = vld [vmem:[#allocation2 + $0x1b0] sm:$0xff]
        %v425 = vld [vmem:[#allocation2 + $0x1b8] sm:$0xff]
        %v426 = vld [vmem:[#allocation2 + $0x1c0] sm:$0xff]
        %v427 = vld [vmem:[#allocation2 + $0x1c8] sm:$0xff]
        %v428 = vld [vmem:[#allocation2 + $0x1d0] sm:$0xff]
        %v429 = vld [vmem:[#allocation2 + $0x1d8] sm:$0xff]
        %v430 = vld [vmem:[#allocation2 + $0x1e0] sm:$0xff]
        %v431 = vld [vmem:[#allocation2 + $0x1e8] sm:$0xff]
        %v432 = vld [vmem:[#allocation2 + $0x1f0] sm:$0xff]
        %v433 = vld [vmem:[#allocation2 + $0x1f8] sm:$0xff]
        %v434 = vld [vmem:[%s244] sm:$0xff]
        %v435 = vld [vmem:[%s244 + $0x8] sm:$0xff]
        %v436 = vld [vmem:[%s244 + $0x10] sm:$0xff]
        %v437 = vld [vmem:[%s244 + $0x18] sm:$0xff]
        %v438 = vld [vmem:[%s244 + $0x20] sm:$0xff]
        %v439 = vld [vmem:[%s244 + $0x28] sm:$0xff]
        %v440 = vld [vmem:[%s244 + $0x30] sm:$0xff]
        %v441 = vld [vmem:[%s244 + $0x38] sm:$0xff]
        %v442 = vld [vmem:[%s244 + $0x40] sm:$0xff]
        %v443 = vld [vmem:[%s244 + $0x48] sm:$0xff]
        %v444 = vld [vmem:[%s244 + $0x50] sm:$0xff]
        %v445 = vld [vmem:[%s244 + $0x58] sm:$0xff]
        %v446 = vld [vmem:[%s244 + $0x60] sm:$0xff]
        %v447 = vld [vmem:[%s244 + $0x68] sm:$0xff]
        %v448 = vld [vmem:[%s244 + $0x70] sm:$0xff]
        %v449 = vld [vmem:[%s244 + $0x78] sm:$0xff]
        %v450 = vld [vmem:[%s244 + $0x80] sm:$0xff]
        %v451 = vld [vmem:[%s244 + $0x88] sm:$0xff]
        %v452 = vld [vmem:[%s244 + $0x90] sm:$0xff]
        %v453 = vld [vmem:[%s244 + $0x98] sm:$0xff]
        %v454 = vld [vmem:[%s244 + $0xa0] sm:$0xff]
        %v455 = vld [vmem:[%s244 + $0xa8] sm:$0xff]
        %v456 = vld [vmem:[%s244 + $0xb0] sm:$0xff]
        %v457 = vld [vmem:[%s244 + $0xb8] sm:$0xff]
        %v458 = vld [vmem:[%s244 + $0xc0] sm:$0xff]
        %v459 = vld [vmem:[%s244 + $0xc8] sm:$0xff]
        %v460 = vld [vmem:[%s244 + $0xd0] sm:$0xff]
        %v461 = vld [vmem:[%s244 + $0xd8] sm:$0xff]
        %v462 = vld [vmem:[%s244 + $0xe0] sm:$0xff]
        %v463 = vld [vmem:[%s244 + $0xe8] sm:$0xff]
        %v464 = vld [vmem:[%s244 + $0xf0] sm:$0xff]
        %v465 = vld [vmem:[%s244 + $0xf8] sm:$0xff]
        %v466 = vld [vmem:[%s244 + $0x100] sm:$0xff]
        %v467 = vld [vmem:[%s244 + $0x108] sm:$0xff]
        %v468 = vld [vmem:[%s244 + $0x110] sm:$0xff]
        %v469 = vld [vmem:[%s244 + $0x118] sm:$0xff]
        %v470 = vld [vmem:[%s244 + $0x120] sm:$0xff]
        %v471 = vld [vmem:[%s244 + $0x128] sm:$0xff]
        %v472 = vld [vmem:[%s244 + $0x130] sm:$0xff]
        %v473 = vld [vmem:[%s244 + $0x138] sm:$0xff]
        %v474 = vld [vmem:[%s244 + $0x140] sm:$0xff]
        %v475 = vld [vmem:[%s244 + $0x148] sm:$0xff]
        %v476 = vld [vmem:[%s244 + $0x150] sm:$0xff]
        %v477 = vld [vmem:[%s244 + $0x158] sm:$0xff]
        %v478 = vld [vmem:[%s244 + $0x160] sm:$0xff]
        %v479 = vld [vmem:[%s244 + $0x168] sm:$0xff]
        %v480 = vld [vmem:[%s244 + $0x170] sm:$0xff]
        %v481 = vld [vmem:[%s244 + $0x178] sm:$0xff]
        %v482 = vld [vmem:[%s244 + $0x180] sm:$0xff]
        %v483 = vld [vmem:[%s244 + $0x188] sm:$0xff]
        %v484 = vld [vmem:[%s244 + $0x190] sm:$0xff]
        %v485 = vld [vmem:[%s244 + $0x198] sm:$0xff]
        %v486 = vld [vmem:[%s244 + $0x1a0] sm:$0xff]
        %v487 = vld [vmem:[%s244 + $0x1a8] sm:$0xff]
        %v488 = vld [vmem:[%s244 + $0x1b0] sm:$0xff]
        %v489 = vld [vmem:[%s244 + $0x1b8] sm:$0xff]
        %v490 = vld [vmem:[%s244 + $0x1c0] sm:$0xff]
        %v491 = vld [vmem:[%s244 + $0x1c8] sm:$0xff]
        %v492 = vld [vmem:[%s244 + $0x1d0] sm:$0xff]
        %v493 = vld [vmem:[%s244 + $0x1d8] sm:$0xff]
        %v494 = vld [vmem:[%s244 + $0x1e0] sm:$0xff]
        %v495 = vld [vmem:[%s244 + $0x1e8] sm:$0xff]
        %v496 = vld [vmem:[%s244 + $0x1f0] sm:$0xff]
        %v497 = vld [vmem:[%s244 + $0x1f8] sm:$0xff]
        %v498 = vld [vmem:[%s244 + $0x200] sm:$0xff]
        %v499 = vld [vmem:[%s244 + $0x208] sm:$0xff]
        %v500 = vld [vmem:[%s244 + $0x210] sm:$0xff]
        %v501 = vld [vmem:[%s244 + $0x218] sm:$0xff]
        %v502 = vld [vmem:[%s244 + $0x220] sm:$0xff]
        %v503 = vld [vmem:[%s244 + $0x228] sm:$0xff]
        %v504 = vld [vmem:[%s244 + $0x230] sm:$0xff]
        %v505 = vld [vmem:[%s244 + $0x238] sm:$0xff]
        %v506 = vld [vmem:[%s244 + $0x240] sm:$0xff]
        %v507 = vld [vmem:[%s244 + $0x248] sm:$0xff]
        %v508 = vld [vmem:[%s244 + $0x250] sm:$0xff]
        %v509 = vld [vmem:[%s244 + $0x258] sm:$0xff]
        %v510 = vld [vmem:[%s244 + $0x260] sm:$0xff]
        %v511 = vld [vmem:[%s244 + $0x268] sm:$0xff]
        %v512 = vld [vmem:[%s244 + $0x270] sm:$0xff]
        %v513 = vld [vmem:[%s244 + $0x278] sm:$0xff]
        %v514 = vld [vmem:[%s244 + $0x280] sm:$0xff]
        %v515 = vld [vmem:[%s244 + $0x288] sm:$0xff]
        %v516 = vld [vmem:[%s244 + $0x290] sm:$0xff]
        %v517 = vld [vmem:[%s244 + $0x298] sm:$0xff]
        %v518 = vld [vmem:[%s244 + $0x2a0] sm:$0xff]
        %v519 = vld [vmem:[%s244 + $0x2a8] sm:$0xff]
        %v520 = vld [vmem:[%s244 + $0x2b0] sm:$0xff]
        %v521 = vld [vmem:[%s244 + $0x2b8] sm:$0xff]
        %v522 = vld [vmem:[%s244 + $0x2c0] sm:$0xff]
        %v523 = vld [vmem:[%s244 + $0x2c8] sm:$0xff]
        %v524 = vld [vmem:[%s244 + $0x2d0] sm:$0xff]
        %v525 = vld [vmem:[%s244 + $0x2d8] sm:$0xff]
        %v526 = vld [vmem:[%s244 + $0x2e0] sm:$0xff]
        %v527 = vld [vmem:[%s244 + $0x2e8] sm:$0xff]
        %v528 = vld [vmem:[%s244 + $0x2f0] sm:$0xff]
        %v529 = vld [vmem:[%s244 + $0x2f8] sm:$0xff]
        %v530 = vld [vmem:[%s244 + $0x300] sm:$0xff]
        %v531 = vld [vmem:[%s244 + $0x308] sm:$0xff]
        %v532 = vld [vmem:[%s244 + $0x310] sm:$0xff]
        %v533 = vld [vmem:[%s244 + $0x318] sm:$0xff]
        %v534 = vld [vmem:[%s244 + $0x320] sm:$0xff]
        %v535 = vld [vmem:[%s244 + $0x328] sm:$0xff]
        %v536 = vld [vmem:[%s244 + $0x330] sm:$0xff]
        %v537 = vld [vmem:[%s244 + $0x338] sm:$0xff]
        %v538 = vld [vmem:[%s244 + $0x340] sm:$0xff]
        %v539 = vld [vmem:[%s244 + $0x348] sm:$0xff]
        %v540 = vld [vmem:[%s244 + $0x350] sm:$0xff]
        %v541 = vld [vmem:[%s244 + $0x358] sm:$0xff]
        %v542 = vld [vmem:[%s244 + $0x360] sm:$0xff]
        %v543 = vld [vmem:[%s244 + $0x368] sm:$0xff]
        %v544 = vld [vmem:[%s244 + $0x370] sm:$0xff]
        %v545 = vld [vmem:[%s244 + $0x378] sm:$0xff]
        %v546 = vld [vmem:[%s244 + $0x380] sm:$0xff]
        %v547 = vld [vmem:[%s244 + $0x388] sm:$0xff]
        %v548 = vld [vmem:[%s244 + $0x390] sm:$0xff]
        %v549 = vld [vmem:[%s244 + $0x398] sm:$0xff]
        %v550 = vld [vmem:[%s244 + $0x3a0] sm:$0xff]
        %v551 = vld [vmem:[%s244 + $0x3a8] sm:$0xff]
        %v552 = vld [vmem:[%s244 + $0x3b0] sm:$0xff]
        %v553 = vld [vmem:[%s244 + $0x3b8] sm:$0xff]
        %v554 = vld [vmem:[%s244 + $0x3c0] sm:$0xff]
        %v555 = vld [vmem:[%s244 + $0x3c8] sm:$0xff]
        %v556 = vld [vmem:[%s244 + $0x3d0] sm:$0xff]
        %v557 = vld [vmem:[%s244 + $0x3d8] sm:$0xff]
        %v558 = vld [vmem:[%s244 + $0x3e0] sm:$0xff]
        %v559 = vld [vmem:[%s244 + $0x3e8] sm:$0xff]
        %v560 = vld [vmem:[%s244 + $0x3f0] sm:$0xff]
        %v561 = vld [vmem:[%s244 + $0x3f8] sm:$0xff]
        %v562 = vld [vmem:[%s253] sm:$0xff]
        %v563 = vld [vmem:[%s253 + $0x8] sm:$0xff]
        %v564 = vld [vmem:[%s253 + $0x10] sm:$0xff]
        %v565 = vld [vmem:[%s253 + $0x18] sm:$0xff]
        %v566 = vld [vmem:[%s253 + $0x20] sm:$0xff]
        %v567 = vld [vmem:[%s253 + $0x28] sm:$0xff]
        %v568 = vld [vmem:[%s253 + $0x30] sm:$0xff]
        %v569 = vld [vmem:[%s253 + $0x38] sm:$0xff]
        %v570 = vld [vmem:[%s253 + $0x40] sm:$0xff]
        %v571 = vld [vmem:[%s253 + $0x48] sm:$0xff]
        %v572 = vld [vmem:[%s253 + $0x50] sm:$0xff]
        %v573 = vld [vmem:[%s253 + $0x58] sm:$0xff]
        %v574 = vld [vmem:[%s253 + $0x60] sm:$0xff]
        %v575 = vld [vmem:[%s253 + $0x68] sm:$0xff]
        %v576 = vld [vmem:[%s253 + $0x70] sm:$0xff]
        %v577 = vld [vmem:[%s253 + $0x78] sm:$0xff]
        %v578 = vld [vmem:[%s253 + $0x80] sm:$0xff]
        %v579 = vld [vmem:[%s253 + $0x88] sm:$0xff]
        %v580 = vld [vmem:[%s253 + $0x90] sm:$0xff]
        %v581 = vld [vmem:[%s253 + $0x98] sm:$0xff]
        %v582 = vld [vmem:[%s253 + $0xa0] sm:$0xff]
        %v583 = vld [vmem:[%s253 + $0xa8] sm:$0xff]
        %v584 = vld [vmem:[%s253 + $0xb0] sm:$0xff]
        %v585 = vld [vmem:[%s253 + $0xb8] sm:$0xff]
        %v586 = vld [vmem:[%s253 + $0xc0] sm:$0xff]
        %v587 = vld [vmem:[%s253 + $0xc8] sm:$0xff]
        %v588 = vld [vmem:[%s253 + $0xd0] sm:$0xff]
        %v589 = vld [vmem:[%s253 + $0xd8] sm:$0xff]
        %v590 = vld [vmem:[%s253 + $0xe0] sm:$0xff]
        %v591 = vld [vmem:[%s253 + $0xe8] sm:$0xff]
        %v592 = vld [vmem:[%s253 + $0xf0] sm:$0xff]
        %v593 = vld [vmem:[%s253 + $0xf8] sm:$0xff]
        %v594 = vld [vmem:[%s253 + $0x100] sm:$0xff]
        %v595 = vld [vmem:[%s253 + $0x108] sm:$0xff]
        %v596 = vld [vmem:[%s253 + $0x110] sm:$0xff]
        %v597 = vld [vmem:[%s253 + $0x118] sm:$0xff]
        %v598 = vld [vmem:[%s253 + $0x120] sm:$0xff]
        %v599 = vld [vmem:[%s253 + $0x128] sm:$0xff]
        %v600 = vld [vmem:[%s253 + $0x130] sm:$0xff]
        %v601 = vld [vmem:[%s253 + $0x138] sm:$0xff]
        %v602 = vld [vmem:[%s253 + $0x140] sm:$0xff]
        %v603 = vld [vmem:[%s253 + $0x148] sm:$0xff]
        %v604 = vld [vmem:[%s253 + $0x150] sm:$0xff]
        %v605 = vld [vmem:[%s253 + $0x158] sm:$0xff]
        %v606 = vld [vmem:[%s253 + $0x160] sm:$0xff]
        %v607 = vld [vmem:[%s253 + $0x168] sm:$0xff]
        %v608 = vld [vmem:[%s253 + $0x170] sm:$0xff]
        %v609 = vld [vmem:[%s253 + $0x178] sm:$0xff]
        %v610 = vld [vmem:[%s253 + $0x180] sm:$0xff]
        %v611 = vld [vmem:[%s253 + $0x188] sm:$0xff]
        %v612 = vld [vmem:[%s253 + $0x190] sm:$0xff]
        %v613 = vld [vmem:[%s253 + $0x198] sm:$0xff]
        %v614 = vld [vmem:[%s253 + $0x1a0] sm:$0xff]
        %v615 = vld [vmem:[%s253 + $0x1a8] sm:$0xff]
        %v616 = vld [vmem:[%s253 + $0x1b0] sm:$0xff]
        %v617 = vld [vmem:[%s253 + $0x1b8] sm:$0xff]
        %v618 = vld [vmem:[%s253 + $0x1c0] sm:$0xff]
        %v619 = vld [vmem:[%s253 + $0x1c8] sm:$0xff]
        %v620 = vld [vmem:[%s253 + $0x1d0] sm:$0xff]
        %v621 = vld [vmem:[%s253 + $0x1d8] sm:$0xff]
        %v622 = vld [vmem:[%s253 + $0x1e0] sm:$0xff]
        %v623 = vld [vmem:[%s253 + $0x1e8] sm:$0xff]
        %v624 = vld [vmem:[%s253 + $0x1f0] sm:$0xff]
        %v625 = vld [vmem:[%s253 + $0x1f8] sm:$0xff]
        %v626 = vld [vmem:[%s253 + $0x200] sm:$0xff]
        %v627 = vld [vmem:[%s253 + $0x208] sm:$0xff]
        %v628 = vld [vmem:[%s253 + $0x210] sm:$0xff]
        %v629 = vld [vmem:[%s253 + $0x218] sm:$0xff]
        %v630 = vld [vmem:[%s253 + $0x220] sm:$0xff]
        %v631 = vld [vmem:[%s253 + $0x228] sm:$0xff]
        %v632 = vld [vmem:[%s253 + $0x230] sm:$0xff]
        %v633 = vld [vmem:[%s253 + $0x238] sm:$0xff]
        %v634 = vld [vmem:[%s253 + $0x240] sm:$0xff]
        %v635 = vld [vmem:[%s253 + $0x248] sm:$0xff]
        %v636 = vld [vmem:[%s253 + $0x250] sm:$0xff]
        %v637 = vld [vmem:[%s253 + $0x258] sm:$0xff]
        %v638 = vld [vmem:[%s253 + $0x260] sm:$0xff]
        %v639 = vld [vmem:[%s253 + $0x268] sm:$0xff]
        %v640 = vld [vmem:[%s253 + $0x270] sm:$0xff]
        %v641 = vld [vmem:[%s253 + $0x278] sm:$0xff]
        %v642 = vld [vmem:[%s253 + $0x280] sm:$0xff]
        %v643 = vld [vmem:[%s253 + $0x288] sm:$0xff]
        %v644 = vld [vmem:[%s253 + $0x290] sm:$0xff]
        %v645 = vld [vmem:[%s253 + $0x298] sm:$0xff]
        %v646 = vld [vmem:[%s253 + $0x2a0] sm:$0xff]
        %v647 = vld [vmem:[%s253 + $0x2a8] sm:$0xff]
        %v648 = vld [vmem:[%s253 + $0x2b0] sm:$0xff]
        %v649 = vld [vmem:[%s253 + $0x2b8] sm:$0xff]
        %v650 = vld [vmem:[%s253 + $0x2c0] sm:$0xff]
        %v651 = vld [vmem:[%s253 + $0x2c8] sm:$0xff]
        %v652 = vld [vmem:[%s253 + $0x2d0] sm:$0xff]
        %v653 = vld [vmem:[%s253 + $0x2d8] sm:$0xff]
        %v654 = vld [vmem:[%s253 + $0x2e0] sm:$0xff]
        %v655 = vld [vmem:[%s253 + $0x2e8] sm:$0xff]
        %v656 = vld [vmem:[%s253 + $0x2f0] sm:$0xff]
        %v657 = vld [vmem:[%s253 + $0x2f8] sm:$0xff]
        %v658 = vld [vmem:[%s253 + $0x300] sm:$0xff]
        %v659 = vld [vmem:[%s253 + $0x308] sm:$0xff]
        %v660 = vld [vmem:[%s253 + $0x310] sm:$0xff]
        %v661 = vld [vmem:[%s253 + $0x318] sm:$0xff]
        %v662 = vld [vmem:[%s253 + $0x320] sm:$0xff]
        %v663 = vld [vmem:[%s253 + $0x328] sm:$0xff]
        %v664 = vld [vmem:[%s253 + $0x330] sm:$0xff]
        %v665 = vld [vmem:[%s253 + $0x338] sm:$0xff]
        %v666 = vld [vmem:[%s253 + $0x340] sm:$0xff]
        %v667 = vld [vmem:[%s253 + $0x348] sm:$0xff]
        %v668 = vld [vmem:[%s253 + $0x350] sm:$0xff]
        %v669 = vld [vmem:[%s253 + $0x358] sm:$0xff]
        %v670 = vld [vmem:[%s253 + $0x360] sm:$0xff]
        %v671 = vld [vmem:[%s253 + $0x368] sm:$0xff]
        %v672 = vld [vmem:[%s253 + $0x370] sm:$0xff]
        %v673 = vld [vmem:[%s253 + $0x378] sm:$0xff]
        %v674 = vld [vmem:[%s253 + $0x380] sm:$0xff]
        %v675 = vld [vmem:[%s253 + $0x388] sm:$0xff]
        %v676 = vld [vmem:[%s253 + $0x390] sm:$0xff]
        %v677 = vld [vmem:[%s253 + $0x398] sm:$0xff]
        %v678 = vld [vmem:[%s253 + $0x3a0] sm:$0xff]
        %v679 = vld [vmem:[%s253 + $0x3a8] sm:$0xff]
        %v680 = vld [vmem:[%s253 + $0x3b0] sm:$0xff]
        %v681 = vld [vmem:[%s253 + $0x3b8] sm:$0xff]
        %v682 = vld [vmem:[%s253 + $0x3c0] sm:$0xff]
        %v683 = vld [vmem:[%s253 + $0x3c8] sm:$0xff]
        %v684 = vld [vmem:[%s253 + $0x3d0] sm:$0xff]
        %v685 = vld [vmem:[%s253 + $0x3d8] sm:$0xff]
        %v686 = vld [vmem:[%s253 + $0x3e0] sm:$0xff]
        %v687 = vld [vmem:[%s253 + $0x3e8] sm:$0xff]
        %v688 = vld [vmem:[%s253 + $0x3f0] sm:$0xff]
        %v689 = vld [vmem:[%s253 + $0x3f8] sm:$0xff]
        %690 = vmatprep.subr.mxu0 %v563
        %691 = vmatpush1.msra.mxu0 %v562
        %692 = vmatprep.subr.mxu0 %v565
        %693 = vmatpush1.msra.mxu0 %v564
        %694 = vmatprep.subr.mxu0 %v567
        %695 = vmatpush1.msra.mxu0 %v566
        %696 = vmatprep.subr.mxu0 %v569
        %697 = vmatpush1.msra.mxu0 %v568
        %698 = vmatprep.subr.mxu0 %v571
        %699 = vmatpush1.msra.mxu0 %v570
        %700 = vmatprep.subr.mxu0 %v573
        %701 = vmatpush1.msra.mxu0 %v572
        %702 = vmatprep.subr.mxu0 %v575
        %703 = vmatpush1.msra.mxu0 %v574
        %704 = vmatprep.subr.mxu0 %v577
        %705 = vmatpush1.msra.mxu0 %v576
        %706 = vmatprep.subr.mxu0 %v579
        %707 = vmatpush1.msra.mxu0 %v578
        %708 = vmatprep.subr.mxu0 %v581
        %709 = vmatpush1.msra.mxu0 %v580
        %710 = vmatprep.subr.mxu0 %v583
        %711 = vmatpush1.msra.mxu0 %v582
        %712 = vmatprep.subr.mxu0 %v585
        %713 = vmatpush1.msra.mxu0 %v584
        %714 = vmatprep.subr.mxu0 %v587
        %715 = vmatpush1.msra.mxu0 %v586
        %716 = vmatprep.subr.mxu0 %v589
        %717 = vmatpush1.msra.mxu0 %v588
        %718 = vmatprep.subr.mxu0 %v591
        %719 = vmatpush1.msra.mxu0 %v590
        %720 = vmatprep.subr.mxu0 %v593
        %721 = vmatpush1.msra.mxu0 %v592
        %722 = vmatprep.subr.mxu0 %v595
        %723 = vmatpush1.msra.mxu0 %v594
        %724 = vmatprep.subr.mxu0 %v597
        %725 = vmatpush1.msra.mxu0 %v596
        %726 = vmatprep.subr.mxu0 %v599
        %727 = vmatpush1.msra.mxu0 %v598
        %728 = vmatprep.subr.mxu0 %v601
        %729 = vmatpush1.msra.mxu0 %v600
        %730 = vmatprep.subr.mxu0 %v603
        %731 = vmatpush1.msra.mxu0 %v602
        %732 = vmatprep.subr.mxu0 %v605
        %733 = vmatpush1.msra.mxu0 %v604
        %734 = vmatprep.subr.mxu0 %v607
        %735 = vmatpush1.msra.mxu0 %v606
        %736 = vmatprep.subr.mxu0 %v609
        %737 = vmatpush1.msra.mxu0 %v608
        %738 = vmatprep.subr.mxu0 %v611
        %739 = vmatpush1.msra.mxu0 %v610
        %740 = vmatprep.subr.mxu0 %v613
        %741 = vmatpush1.msra.mxu0 %v612
        %742 = vmatprep.subr.mxu0 %v615
        %743 = vmatpush1.msra.mxu0 %v614
        %744 = vmatprep.subr.mxu0 %v617
        %745 = vmatpush1.msra.mxu0 %v616
        %746 = vmatprep.subr.mxu0 %v619
        %747 = vmatpush1.msra.mxu0 %v618
        %748 = vmatprep.subr.mxu0 %v621
        %749 = vmatpush1.msra.mxu0 %v620
        %750 = vmatprep.subr.mxu0 %v623
        %751 = vmatpush1.msra.mxu0 %v622
        %752 = vmatprep.subr.mxu0 %v625
        %753 = vmatpush1.msra.mxu0 %v624
        %754 = vmatprep.mubr.f32.mxu0 %v435
        %755 = vmatmul.mubr.f32.gmra.mrb[0].mxu0 %v434
        %v756 = vpop.f32.mrb[0].mxu0
        %v757 = vadd.f32 0.0, %v756
        %v758 = vpop.f32.mrb[0].mxu0
        %v759 = vadd.f32 0.0, %v758
        %760 = vmatprep.mubr.f32.mxu0 %v439
        %761 = vmatmul.mubr.f32.gmra.mrb[0].mxu0 %v438
        %v762 = vpop.f32.mrb[0].mxu0
        %v763 = vadd.f32 0.0, %v762
        %v764 = vpop.f32.mrb[0].mxu0
        %v765 = vadd.f32 0.0, %v764
        %766 = vmatprep.mubr.f32.mxu0 %v443
        %767 = vmatmul.mubr.f32.gmra.mrb[0].mxu0 %v442
        %v768 = vpop.f32.mrb[0].mxu0
        %v769 = vadd.f32 0.0, %v768
        %v770 = vpop.f32.mrb[0].mxu0
        %v771 = vadd.f32 0.0, %v770
        %772 = vmatprep.mubr.f32.mxu0 %v447
        %773 = vmatmul.mubr.f32.gmra.mrb[0].mxu0 %v446
        %v774 = vpop.f32.mrb[0].mxu0
        %v775 = vadd.f32 0.0, %v774
        %v776 = vpop.f32.mrb[0].mxu0
        %v777 = vadd.f32 0.0, %v776
        %778 = vmatprep.mubr.f32.mxu0 %v451
        %779 = vmatmul.mubr.f32.gmra.mrb[0].mxu0 %v450
        %v780 = vpop.f32.mrb[0].mxu0
        %v781 = vadd.f32 0.0, %v780
        %v782 = vpop.f32.mrb[0].mxu0
        %v783 = vadd.f32 0.0, %v782
        %784 = vmatprep.mubr.f32.mxu0 %v455
        %785 = vmatmul.mubr.f32.gmra.mrb[0].mxu0 %v454
        %v786 = vpop.f32.mrb[0].mxu0
        %v787 = vadd.f32 0.0, %v786
        %v788 = vpop.f32.mrb[0].mxu0
        %v789 = vadd.f32 0.0, %v788
        %790 = vmatprep.mubr.f32.mxu0 %v459
        %791 = vmatmul.mubr.f32.gmra.mrb[0].mxu0 %v458
        %v792 = vpop.f32.mrb[0].mxu0
        %v793 = vadd.f32 0.0, %v792
        %v794 = vpop.f32.mrb[0].mxu0
        %v795 = vadd.f32 0.0, %v794
        %796 = vmatprep.mubr.f32.mxu0 %v463
        %797 = vmatmul.mubr.f32.gmra.mrb[0].mxu0 %v462
        %v798 = vpop.f32.mrb[0].mxu0
        %v799 = vadd.f32 0.0, %v798
        %v800 = vpop.f32.mrb[0].mxu0
        %v801 = vadd.f32 0.0, %v800
        %802 = vmatprep.mubr.f32.mxu0 %v467
        %803 = vmatmul.mubr.f32.gmra.mrb[0].mxu0 %v466
        %v804 = vpop.f32.mrb[0].mxu0
        %v805 = vadd.f32 0.0, %v804
        %v806 = vpop.f32.mrb[0].mxu0
        %v807 = vadd.f32 0.0, %v806
        %808 = vmatprep.mubr.f32.mxu0 %v471
        %809 = vmatmul.mubr.f32.gmra.mrb[0].mxu0 %v470
        %v810 = vpop.f32.mrb[0].mxu0
        %v811 = vadd.f32 0.0, %v810
        %v812 = vpop.f32.mrb[0].mxu0
        %v813 = vadd.f32 0.0, %v812
        %814 = vmatprep.mubr.f32.mxu0 %v475
        %815 = vmatmul.mubr.f32.gmra.mrb[0].mxu0 %v474
        %v816 = vpop.f32.mrb[0].mxu0
        %v817 = vadd.f32 0.0, %v816
        %v818 = vpop.f32.mrb[0].mxu0
        %v819 = vadd.f32 0.0, %v818
        %820 = vmatprep.mubr.f32.mxu0 %v479
        %821 = vmatmul.mubr.f32.gmra.mrb[0].mxu0 %v478
        %v822 = vpop.f32.mrb[0].mxu0
        %v823 = vadd.f32 0.0, %v822
        %v824 = vpop.f32.mrb[0].mxu0
        %v825 = vadd.f32 0.0, %v824
        %826 = vmatprep.mubr.f32.mxu0 %v483
        %827 = vmatmul.mubr.f32.gmra.mrb[0].mxu0 %v482
        %v828 = vpop.f32.mrb[0].mxu0
        %v829 = vadd.f32 0.0, %v828
        %v830 = vpop.f32.mrb[0].mxu0
        %v831 = vadd.f32 0.0, %v830
        %832 = vmatprep.mubr.f32.mxu0 %v487
        %833 = vmatmul.mubr.f32.gmra.mrb[0].mxu0 %v486
        %v834 = vpop.f32.mrb[0].mxu0
        %v835 = vadd.f32 0.0, %v834
        %v836 = vpop.f32.mrb[0].mxu0
        %v837 = vadd.f32 0.0, %v836
        %838 = vmatprep.mubr.f32.mxu0 %v491
        %839 = vmatmul.mubr.f32.gmra.mrb[0].mxu0 %v490
        %v840 = vpop.f32.mrb[0].mxu0
        %v841 = vadd.f32 0.0, %v840
        %v842 = vpop.f32.mrb[0].mxu0
        %v843 = vadd.f32 0.0, %v842
        %844 = vmatprep.mubr.f32.mxu0 %v495
        %845 = vmatmul.mubr.f32.gmra.mrb[0].mxu0 %v494
        %v846 = vpop.f32.mrb[0].mxu0
        %v847 = vadd.f32 0.0, %v846
        %v848 = vpop.f32.mrb[0].mxu0
        %v849 = vadd.f32 0.0, %v848
        %850 = vmatprep.mubr.f32.mxu0 %v499
        %851 = vmatmul.mubr.f32.gmra.mrb[0].mxu0 %v498
        %v852 = vpop.f32.mrb[0].mxu0
        %v853 = vadd.f32 0.0, %v852
        %v854 = vpop.f32.mrb[0].mxu0
        %v855 = vadd.f32 0.0, %v854
        %856 = vmatprep.mubr.f32.mxu0 %v503
        %857 = vmatmul.mubr.f32.gmra.mrb[0].mxu0 %v502
        %v858 = vpop.f32.mrb[0].mxu0
        %v859 = vadd.f32 0.0, %v858
        %v860 = vpop.f32.mrb[0].mxu0
        %v861 = vadd.f32 0.0, %v860
        %862 = vmatprep.mubr.f32.mxu0 %v507
        %863 = vmatmul.mubr.f32.gmra.mrb[0].mxu0 %v506
        %v864 = vpop.f32.mrb[0].mxu0
        %v865 = vadd.f32 0.0, %v864
        %v866 = vpop.f32.mrb[0].mxu0
        %v867 = vadd.f32 0.0, %v866
        %868 = vmatprep.mubr.f32.mxu0 %v511
        %869 = vmatmul.mubr.f32.gmra.mrb[0].mxu0 %v510
        %v870 = vpop.f32.mrb[0].mxu0
        %v871 = vadd.f32 0.0, %v870
        %v872 = vpop.f32.mrb[0].mxu0
        %v873 = vadd.f32 0.0, %v872
        %874 = vmatprep.mubr.f32.mxu0 %v515
        %875 = vmatmul.mubr.f32.gmra.mrb[0].mxu0 %v514
        %v876 = vpop.f32.mrb[0].mxu0
        %v877 = vadd.f32 0.0, %v876
        %v878 = vpop.f32.mrb[0].mxu0
        %v879 = vadd.f32 0.0, %v878
        %880 = vmatprep.mubr.f32.mxu0 %v519
        %881 = vmatmul.mubr.f32.gmra.mrb[0].mxu0 %v518
        %v882 = vpop.f32.mrb[0].mxu0
        %v883 = vadd.f32 0.0, %v882
        %v884 = vpop.f32.mrb[0].mxu0
        %v885 = vadd.f32 0.0, %v884
        %886 = vmatprep.mubr.f32.mxu0 %v523
        %887 = vmatmul.mubr.f32.gmra.mrb[0].mxu0 %v522
        %v888 = vpop.f32.mrb[0].mxu0
        %v889 = vadd.f32 0.0, %v888
        %v890 = vpop.f32.mrb[0].mxu0
        %v891 = vadd.f32 0.0, %v890
        %892 = vmatprep.mubr.f32.mxu0 %v527
        %893 = vmatmul.mubr.f32.gmra.mrb[0].mxu0 %v526
        %v894 = vpop.f32.mrb[0].mxu0
        %v895 = vadd.f32 0.0, %v894
        %v896 = vpop.f32.mrb[0].mxu0
        %v897 = vadd.f32 0.0, %v896
        %898 = vmatprep.mubr.f32.mxu0 %v531
        %899 = vmatmul.mubr.f32.gmra.mrb[0].mxu0 %v530
        %v900 = vpop.f32.mrb[0].mxu0
        %v901 = vadd.f32 0.0, %v900
        %v902 = vpop.f32.mrb[0].mxu0
        %v903 = vadd.f32 0.0, %v902
        %904 = vmatprep.mubr.f32.mxu0 %v535
        %905 = vmatmul.mubr.f32.gmra.mrb[0].mxu0 %v534
        %v906 = vpop.f32.mrb[0].mxu0
        %v907 = vadd.f32 0.0, %v906
        %v908 = vpop.f32.mrb[0].mxu0
        %v909 = vadd.f32 0.0, %v908
        %910 = vmatprep.mubr.f32.mxu0 %v539
        %911 = vmatmul.mubr.f32.gmra.mrb[0].mxu0 %v538
        %v912 = vpop.f32.mrb[0].mxu0
        %v913 = vadd.f32 0.0, %v912
        %v914 = vpop.f32.mrb[0].mxu0
        %v915 = vadd.f32 0.0, %v914
        %916 = vmatprep.mubr.f32.mxu0 %v543
        %917 = vmatmul.mubr.f32.gmra.mrb[0].mxu0 %v542
        %v918 = vpop.f32.mrb[0].mxu0
        %v919 = vadd.f32 0.0, %v918
        %v920 = vpop.f32.mrb[0].mxu0
        %v921 = vadd.f32 0.0, %v920
        %922 = vmatprep.mubr.f32.mxu0 %v547
        %923 = vmatmul.mubr.f32.gmra.mrb[0].mxu0 %v546
        %v924 = vpop.f32.mrb[0].mxu0
        %v925 = vadd.f32 0.0, %v924
        %v926 = vpop.f32.mrb[0].mxu0
        %v927 = vadd.f32 0.0, %v926
        %928 = vmatprep.mubr.f32.mxu0 %v551
        %929 = vmatmul.mubr.f32.gmra.mrb[0].mxu0 %v550
        %v930 = vpop.f32.mrb[0].mxu0
        %v931 = vadd.f32 0.0, %v930
        %v932 = vpop.f32.mrb[0].mxu0
        %v933 = vadd.f32 0.0, %v932
        %934 = vmatprep.mubr.f32.mxu0 %v555
        %935 = vmatmul.mubr.f32.gmra.mrb[0].mxu0 %v554
        %v936 = vpop.f32.mrb[0].mxu0
        %v937 = vadd.f32 0.0, %v936
        %v938 = vpop.f32.mrb[0].mxu0
        %v939 = vadd.f32 0.0, %v938
        %940 = vmatprep.mubr.f32.mxu0 %v559
        %941 = vmatmul.mubr.f32.gmra.mrb[0].mxu0 %v558
        %v942 = vpop.f32.mrb[0].mxu0
        %v943 = vadd.f32 0.0, %v942
        %v944 = vpop.f32.mrb[0].mxu0
        %v945 = vadd.f32 0.0, %v944
        %946 = vdwg.mxu0
        %947 = vmatprep.subr.mxu0 %v627
        %948 = vmatpush1.msra.mxu0 %v626
        %949 = vmatprep.subr.mxu0 %v629
        %950 = vmatpush1.msra.mxu0 %v628
        %951 = vmatprep.subr.mxu0 %v631
        %952 = vmatpush1.msra.mxu0 %v630
        %953 = vmatprep.subr.mxu0 %v633
        %954 = vmatpush1.msra.mxu0 %v632
        %955 = vmatprep.subr.mxu0 %v635
        %956 = vmatpush1.msra.mxu0 %v634
        %957 = vmatprep.subr.mxu0 %v637
        %958 = vmatpush1.msra.mxu0 %v636
        %959 = vmatprep.subr.mxu0 %v639
        %960 = vmatpush1.msra.mxu0 %v638
        %961 = vmatprep.subr.mxu0 %v641
        %962 = vmatpush1.msra.mxu0 %v640
        %963 = vmatprep.subr.mxu0 %v643
        %964 = vmatpush1.msra.mxu0 %v642
        %965 = vmatprep.subr.mxu0 %v645
        %966 = vmatpush1.msra.mxu0 %v644
        %967 = vmatprep.subr.mxu0 %v647
        %968 = vmatpush1.msra.mxu0 %v646
        %969 = vmatprep.subr.mxu0 %v649
        %970 = vmatpush1.msra.mxu0 %v648
        %971 = vmatprep.subr.mxu0 %v651
        %972 = vmatpush1.msra.mxu0 %v650
        %973 = vmatprep.subr.mxu0 %v653
        %974 = vmatpush1.msra.mxu0 %v652
        %975 = vmatprep.subr.mxu0 %v655
        %976 = vmatpush1.msra.mxu0 %v654
        %977 = vmatprep.subr.mxu0 %v657
        %978 = vmatpush1.msra.mxu0 %v656
        %979 = vmatprep.subr.mxu0 %v659
        %980 = vmatpush1.msra.mxu0 %v658
        %981 = vmatprep.subr.mxu0 %v661
        %982 = vmatpush1.msra.mxu0 %v660
        %983 = vmatprep.subr.mxu0 %v663
        %984 = vmatpush1.msra.mxu0 %v662
        %985 = vmatprep.subr.mxu0 %v665
        %986 = vmatpush1.msra.mxu0 %v664
        %987 = vmatprep.subr.mxu0 %v667
        %988 = vmatpush1.msra.mxu0 %v666
        %989 = vmatprep.subr.mxu0 %v669
        %990 = vmatpush1.msra.mxu0 %v668
        %991 = vmatprep.subr.mxu0 %v671
        %992 = vmatpush1.msra.mxu0 %v670
        %993 = vmatprep.subr.mxu0 %v673
        %994 = vmatpush1.msra.mxu0 %v672
        %995 = vmatprep.subr.mxu0 %v675
        %996 = vmatpush1.msra.mxu0 %v674
        %997 = vmatprep.subr.mxu0 %v677
        %998 = vmatpush1.msra.mxu0 %v676
        %999 = vmatprep.subr.mxu0 %v679
        %1000 = vmatpush1.msra.mxu0 %v678
        %1001 = vmatprep.subr.mxu0 %v681
        %1002 = vmatpush1.msra.mxu0 %v680
        %1003 = vmatprep.subr.mxu0 %v683
        %1004 = vmatpush1.msra.mxu0 %v682
        %1005 = vmatprep.subr.mxu0 %v685
        %1006 = vmatpush1.msra.mxu0 %v684
        %1007 = vmatprep.subr.mxu0 %v687
        %1008 = vmatpush1.msra.mxu0 %v686
        %1009 = vmatprep.subr.mxu0 %v689
        %1010 = vmatpush1.msra.mxu0 %v688
        %1011 = vmatprep.mubr.f32.mxu0 %v437
        %1012 = vmatmul.mubr.f32.gmra.mrb[0].mxu0 %v436
        %v1013 = vpop.f32.mrb[0].mxu0
        %v1014 = vadd.f32 %v757, %v1013
        %v1015 = vpop.f32.mrb[0].mxu0
        %v1016 = vadd.f32 %v759, %v1015
        %1017 = vmatprep.mubr.f32.mxu0 %v441
        %1018 = vmatmul.mubr.f32.gmra.mrb[0].mxu0 %v440
        %v1019 = vpop.f32.mrb[0].mxu0
        %v1020 = vadd.f32 %v763, %v1019
        %v1021 = vpop.f32.mrb[0].mxu0
        %v1022 = vadd.f32 %v765, %v1021
        %1023 = vmatprep.mubr.f32.mxu0 %v445
        %1024 = vmatmul.mubr.f32.gmra.mrb[0].mxu0 %v444
        %v1025 = vpop.f32.mrb[0].mxu0
        %v1026 = vadd.f32 %v769, %v1025
        %v1027 = vpop.f32.mrb[0].mxu0
        %v1028 = vadd.f32 %v771, %v1027
        %1029 = vmatprep.mubr.f32.mxu0 %v449
        %1030 = vmatmul.mubr.f32.gmra.mrb[0].mxu0 %v448
        %v1031 = vpop.f32.mrb[0].mxu0
        %v1032 = vadd.f32 %v775, %v1031
        %v1033 = vpop.f32.mrb[0].mxu0
        %v1034 = vadd.f32 %v777, %v1033
        %1035 = vmatprep.mubr.f32.mxu0 %v453
        %1036 = vmatmul.mubr.f32.gmra.mrb[0].mxu0 %v452
        %v1037 = vpop.f32.mrb[0].mxu0
        %v1038 = vadd.f32 %v781, %v1037
        %v1039 = vpop.f32.mrb[0].mxu0
        %v1040 = vadd.f32 %v783, %v1039
        %1041 = vmatprep.mubr.f32.mxu0 %v457
        %1042 = vmatmul.mubr.f32.gmra.mrb[0].mxu0 %v456
        %v1043 = vpop.f32.mrb[0].mxu0
        %v1044 = vadd.f32 %v787, %v1043
        %v1045 = vpop.f32.mrb[0].mxu0
        %v1046 = vadd.f32 %v789, %v1045
        %1047 = vmatprep.mubr.f32.mxu0 %v461
        %1048 = vmatmul.mubr.f32.gmra.mrb[0].mxu0 %v460
        %v1049 = vpop.f32.mrb[0].mxu0
        %v1050 = vadd.f32 %v793, %v1049
        %v1051 = vpop.f32.mrb[0].mxu0
        %v1052 = vadd.f32 %v795, %v1051
        %1053 = vmatprep.mubr.f32.mxu0 %v465
        %1054 = vmatmul.mubr.f32.gmra.mrb[0].mxu0 %v464
        %v1055 = vpop.f32.mrb[0].mxu0
        %v1056 = vadd.f32 %v799, %v1055
        %v1057 = vpop.f32.mrb[0].mxu0
        %v1058 = vadd.f32 %v801, %v1057
        %1059 = vmatprep.mubr.f32.mxu0 %v469
        %1060 = vmatmul.mubr.f32.gmra.mrb[0].mxu0 %v468
        %v1061 = vpop.f32.mrb[0].mxu0
        %v1062 = vadd.f32 %v805, %v1061
        %v1063 = vpop.f32.mrb[0].mxu0
        %v1064 = vadd.f32 %v807, %v1063
        %1065 = vmatprep.mubr.f32.mxu0 %v473
        %1066 = vmatmul.mubr.f32.gmra.mrb[0].mxu0 %v472
        %v1067 = vpop.f32.mrb[0].mxu0
        %v1068 = vadd.f32 %v811, %v1067
        %v1069 = vpop.f32.mrb[0].mxu0
        %v1070 = vadd.f32 %v813, %v1069
        %1071 = vmatprep.mubr.f32.mxu0 %v477
        %1072 = vmatmul.mubr.f32.gmra.mrb[0].mxu0 %v476
        %v1073 = vpop.f32.mrb[0].mxu0
        %v1074 = vadd.f32 %v817, %v1073
        %v1075 = vpop.f32.mrb[0].mxu0
        %v1076 = vadd.f32 %v819, %v1075
        %1077 = vmatprep.mubr.f32.mxu0 %v481
        %1078 = vmatmul.mubr.f32.gmra.mrb[0].mxu0 %v480
        %v1079 = vpop.f32.mrb[0].mxu0
        %v1080 = vadd.f32 %v823, %v1079
        %v1081 = vpop.f32.mrb[0].mxu0
        %v1082 = vadd.f32 %v825, %v1081
        %1083 = vmatprep.mubr.f32.mxu0 %v485
        %1084 = vmatmul.mubr.f32.gmra.mrb[0].mxu0 %v484
        %v1085 = vpop.f32.mrb[0].mxu0
        %v1086 = vadd.f32 %v829, %v1085
        %v1087 = vpop.f32.mrb[0].mxu0
        %v1088 = vadd.f32 %v831, %v1087
        %1089 = vmatprep.mubr.f32.mxu0 %v489
        %1090 = vmatmul.mubr.f32.gmra.mrb[0].mxu0 %v488
        %v1091 = vpop.f32.mrb[0].mxu0
        %v1092 = vadd.f32 %v835, %v1091
        %v1093 = vpop.f32.mrb[0].mxu0
        %v1094 = vadd.f32 %v837, %v1093
        %1095 = vmatprep.mubr.f32.mxu0 %v493
        %1096 = vmatmul.mubr.f32.gmra.mrb[0].mxu0 %v492
        %v1097 = vpop.f32.mrb[0].mxu0
        %v1098 = vadd.f32 %v841, %v1097
        %v1099 = vpop.f32.mrb[0].mxu0
        %v1100 = vadd.f32 %v843, %v1099
        %1101 = vmatprep.mubr.f32.mxu0 %v497
        %1102 = vmatmul.mubr.f32.gmra.mrb[0].mxu0 %v496
        %v1103 = vpop.f32.mrb[0].mxu0
        %v1104 = vadd.f32 %v847, %v1103
        %v1105 = vpop.f32.mrb[0].mxu0
        %v1106 = vadd.f32 %v849, %v1105
        %1107 = vmatprep.mubr.f32.mxu0 %v501
        %1108 = vmatmul.mubr.f32.gmra.mrb[0].mxu0 %v500
        %v1109 = vpop.f32.mrb[0].mxu0
        %v1110 = vadd.f32 %v853, %v1109
        %v1111 = vpop.f32.mrb[0].mxu0
        %v1112 = vadd.f32 %v855, %v1111
        %1113 = vmatprep.mubr.f32.mxu0 %v505
        %1114 = vmatmul.mubr.f32.gmra.mrb[0].mxu0 %v504
        %v1115 = vpop.f32.mrb[0].mxu0
        %v1116 = vadd.f32 %v859, %v1115
        %v1117 = vpop.f32.mrb[0].mxu0
        %v1118 = vadd.f32 %v861, %v1117
        %1119 = vmatprep.mubr.f32.mxu0 %v509
        %1120 = vmatmul.mubr.f32.gmra.mrb[0].mxu0 %v508
        %v1121 = vpop.f32.mrb[0].mxu0
        %v1122 = vadd.f32 %v865, %v1121
        %v1123 = vpop.f32.mrb[0].mxu0
        %v1124 = vadd.f32 %v867, %v1123
        %1125 = vmatprep.mubr.f32.mxu0 %v513
        %1126 = vmatmul.mubr.f32.gmra.mrb[0].mxu0 %v512
        %v1127 = vpop.f32.mrb[0].mxu0
        %v1128 = vadd.f32 %v871, %v1127
        %v1129 = vpop.f32.mrb[0].mxu0
        %v1130 = vadd.f32 %v873, %v1129
        %1131 = vmatprep.mubr.f32.mxu0 %v517
        %1132 = vmatmul.mubr.f32.gmra.mrb[0].mxu0 %v516
        %v1133 = vpop.f32.mrb[0].mxu0
        %v1134 = vadd.f32 %v877, %v1133
        %v1135 = vpop.f32.mrb[0].mxu0
        %v1136 = vadd.f32 %v879, %v1135
        %1137 = vmatprep.mubr.f32.mxu0 %v521
        %1138 = vmatmul.mubr.f32.gmra.mrb[0].mxu0 %v520
        %v1139 = vpop.f32.mrb[0].mxu0
        %v1140 = vadd.f32 %v883, %v1139
        %v1141 = vpop.f32.mrb[0].mxu0
        %v1142 = vadd.f32 %v885, %v1141
        %1143 = vmatprep.mubr.f32.mxu0 %v525
        %1144 = vmatmul.mubr.f32.gmra.mrb[0].mxu0 %v524
        %v1145 = vpop.f32.mrb[0].mxu0
        %v1146 = vadd.f32 %v889, %v1145
        %v1147 = vpop.f32.mrb[0].mxu0
        %v1148 = vadd.f32 %v891, %v1147
        %1149 = vmatprep.mubr.f32.mxu0 %v529
        %1150 = vmatmul.mubr.f32.gmra.mrb[0].mxu0 %v528
        %v1151 = vpop.f32.mrb[0].mxu0
        %v1152 = vadd.f32 %v895, %v1151
        %v1153 = vpop.f32.mrb[0].mxu0
        %v1154 = vadd.f32 %v897, %v1153
        %1155 = vmatprep.mubr.f32.mxu0 %v533
        %1156 = vmatmul.mubr.f32.gmra.mrb[0].mxu0 %v532
        %v1157 = vpop.f32.mrb[0].mxu0
        %v1158 = vadd.f32 %v901, %v1157
        %v1159 = vpop.f32.mrb[0].mxu0
        %v1160 = vadd.f32 %v903, %v1159
        %1161 = vmatprep.mubr.f32.mxu0 %v537
        %1162 = vmatmul.mubr.f32.gmra.mrb[0].mxu0 %v536
        %v1163 = vpop.f32.mrb[0].mxu0
        %v1164 = vadd.f32 %v907, %v1163
        %v1165 = vpop.f32.mrb[0].mxu0
        %v1166 = vadd.f32 %v909, %v1165
        %1167 = vmatprep.mubr.f32.mxu0 %v541
        %1168 = vmatmul.mubr.f32.gmra.mrb[0].mxu0 %v540
        %v1169 = vpop.f32.mrb[0].mxu0
        %v1170 = vadd.f32 %v913, %v1169
        %v1171 = vpop.f32.mrb[0].mxu0
        %v1172 = vadd.f32 %v915, %v1171
        %1173 = vmatprep.mubr.f32.mxu0 %v545
        %1174 = vmatmul.mubr.f32.gmra.mrb[0].mxu0 %v544
        %v1175 = vpop.f32.mrb[0].mxu0
        %v1176 = vadd.f32 %v919, %v1175
        %v1177 = vpop.f32.mrb[0].mxu0
        %v1178 = vadd.f32 %v921, %v1177
        %1179 = vmatprep.mubr.f32.mxu0 %v549
        %1180 = vmatmul.mubr.f32.gmra.mrb[0].mxu0 %v548
        %v1181 = vpop.f32.mrb[0].mxu0
        %v1182 = vadd.f32 %v925, %v1181
        %v1183 = vpop.f32.mrb[0].mxu0
        %v1184 = vadd.f32 %v927, %v1183
        %1185 = vmatprep.mubr.f32.mxu0 %v553
        %1186 = vmatmul.mubr.f32.gmra.mrb[0].mxu0 %v552
        %v1187 = vpop.f32.mrb[0].mxu0
        %v1188 = vadd.f32 %v931, %v1187
        %v1189 = vpop.f32.mrb[0].mxu0
        %v1190 = vadd.f32 %v933, %v1189
        %1191 = vmatprep.mubr.f32.mxu0 %v557
        %1192 = vmatmul.mubr.f32.gmra.mrb[0].mxu0 %v556
        %v1193 = vpop.f32.mrb[0].mxu0
        %v1194 = vadd.f32 %v937, %v1193
        %v1195 = vpop.f32.mrb[0].mxu0
        %v1196 = vadd.f32 %v939, %v1195
        %1197 = vmatprep.mubr.f32.mxu0 %v561
        %1198 = vmatmul.mubr.f32.gmra.mrb[0].mxu0 %v560
        %v1199 = vpop.f32.mrb[0].mxu0
        %v1200 = vadd.f32 %v943, %v1199
        %v1201 = vpop.f32.mrb[0].mxu0
        %v1202 = vadd.f32 %v945, %v1201
        %1203 = vdwg.mxu0
        %v1204 = vadd.f32 %v370, %v1014
        %v1205 = vadd.f32 %v371, %v1016
        %v1206 = vadd.f32 %v372, %v1020
        %v1207 = vadd.f32 %v373, %v1022
        %v1208 = vadd.f32 %v374, %v1026
        %v1209 = vadd.f32 %v375, %v1028
        %v1210 = vadd.f32 %v376, %v1032
        %v1211 = vadd.f32 %v377, %v1034
        %v1212 = vadd.f32 %v378, %v1038
        %v1213 = vadd.f32 %v379, %v1040
        %v1214 = vadd.f32 %v380, %v1044
        %v1215 = vadd.f32 %v381, %v1046
        %v1216 = vadd.f32 %v382, %v1050
        %v1217 = vadd.f32 %v383, %v1052
        %v1218 = vadd.f32 %v384, %v1056
        %v1219 = vadd.f32 %v385, %v1058
        %v1220 = vadd.f32 %v386, %v1062
        %v1221 = vadd.f32 %v387, %v1064
        %v1222 = vadd.f32 %v388, %v1068
        %v1223 = vadd.f32 %v389, %v1070
        %v1224 = vadd.f32 %v390, %v1074
        %v1225 = vadd.f32 %v391, %v1076
        %v1226 = vadd.f32 %v392, %v1080
        %v1227 = vadd.f32 %v393, %v1082
        %v1228 = vadd.f32 %v394, %v1086
        %v1229 = vadd.f32 %v395, %v1088
        %v1230 = vadd.f32 %v396, %v1092
        %v1231 = vadd.f32 %v397, %v1094
        %v1232 = vadd.f32 %v398, %v1098
        %v1233 = vadd.f32 %v399, %v1100
        %v1234 = vadd.f32 %v400, %v1104
        %v1235 = vadd.f32 %v401, %v1106
        %v1236 = vadd.f32 %v402, %v1110
        %v1237 = vadd.f32 %v403, %v1112
        %v1238 = vadd.f32 %v404, %v1116
        %v1239 = vadd.f32 %v405, %v1118
        %v1240 = vadd.f32 %v406, %v1122
        %v1241 = vadd.f32 %v407, %v1124
        %v1242 = vadd.f32 %v408, %v1128
        %v1243 = vadd.f32 %v409, %v1130
        %v1244 = vadd.f32 %v410, %v1134
        %v1245 = vadd.f32 %v411, %v1136
        %v1246 = vadd.f32 %v412, %v1140
        %v1247 = vadd.f32 %v413, %v1142
        %v1248 = vadd.f32 %v414, %v1146
        %v1249 = vadd.f32 %v415, %v1148
        %v1250 = vadd.f32 %v416, %v1152
        %v1251 = vadd.f32 %v417, %v1154
        %v1252 = vadd.f32 %v418, %v1158
        %v1253 = vadd.f32 %v419, %v1160
        %v1254 = vadd.f32 %v420, %v1164
        %v1255 = vadd.f32 %v421, %v1166
        %v1256 = vadd.f32 %v422, %v1170
        %v1257 = vadd.f32 %v423, %v1172
        %v1258 = vadd.f32 %v424, %v1176
        %v1259 = vadd.f32 %v425, %v1178
        %v1260 = vadd.f32 %v426, %v1182
        %v1261 = vadd.f32 %v427, %v1184
        %v1262 = vadd.f32 %v428, %v1188
        %v1263 = vadd.f32 %v429, %v1190
        %v1264 = vadd.f32 %v430, %v1194
        %v1265 = vadd.f32 %v431, %v1196
        %v1266 = vadd.f32 %v432, %v1200
        %v1267 = vadd.f32 %v433, %v1202
        %1268 = vst [vmem:[#allocation2] sm:$0xff] %v1204
        %1269 = vst [vmem:[#allocation2 + $0x8] sm:$0xff] %v1205
        %1270 = vst [vmem:[#allocation2 + $0x10] sm:$0xff] %v1206
        %1271 = vst [vmem:[#allocation2 + $0x18] sm:$0xff] %v1207
        %1272 = vst [vmem:[#allocation2 + $0x20] sm:$0xff] %v1208
        %1273 = vst [vmem:[#allocation2 + $0x28] sm:$0xff] %v1209
        %1274 = vst [vmem:[#allocation2 + $0x30] sm:$0xff] %v1210
        %1275 = vst [vmem:[#allocation2 + $0x38] sm:$0xff] %v1211
        %1276 = vst [vmem:[#allocation2 + $0x40] sm:$0xff] %v1212
        %1277 = vst [vmem:[#allocation2 + $0x48] sm:$0xff] %v1213
        %1278 = vst [vmem:[#allocation2 + $0x50] sm:$0xff] %v1214
        %1279 = vst [vmem:[#allocation2 + $0x58] sm:$0xff] %v1215
        %1280 = vst [vmem:[#allocation2 + $0x60] sm:$0xff] %v1216
        %1281 = vst [vmem:[#allocation2 + $0x68] sm:$0xff] %v1217
        %1282 = vst [vmem:[#allocation2 + $0x70] sm:$0xff] %v1218
        %1283 = vst [vmem:[#allocation2 + $0x78] sm:$0xff] %v1219
        %1284 = vst [vmem:[#allocation2 + $0x80] sm:$0xff] %v1220
        %1285 = vst [vmem:[#allocation2 + $0x88] sm:$0xff] %v1221
        %1286 = vst [vmem:[#allocation2 + $0x90] sm:$0xff] %v1222
        %1287 = vst [vmem:[#allocation2 + $0x98] sm:$0xff] %v1223
        %1288 = vst [vmem:[#allocation2 + $0xa0] sm:$0xff] %v1224
        %1289 = vst [vmem:[#allocation2 + $0xa8] sm:$0xff] %v1225
        %1290 = vst [vmem:[#allocation2 + $0xb0] sm:$0xff] %v1226
        %1291 = vst [vmem:[#allocation2 + $0xb8] sm:$0xff] %v1227
        %1292 = vst [vmem:[#allocation2 + $0xc0] sm:$0xff] %v1228
        %1293 = vst [vmem:[#allocation2 + $0xc8] sm:$0xff] %v1229
        %1294 = vst [vmem:[#allocation2 + $0xd0] sm:$0xff] %v1230
        %1295 = vst [vmem:[#allocation2 + $0xd8] sm:$0xff] %v1231
        %1296 = vst [vmem:[#allocation2 + $0xe0] sm:$0xff] %v1232
        %1297 = vst [vmem:[#allocation2 + $0xe8] sm:$0xff] %v1233
        %1298 = vst [vmem:[#allocation2 + $0xf0] sm:$0xff] %v1234
        %1299 = vst [vmem:[#allocation2 + $0xf8] sm:$0xff] %v1235
        %1300 = vst [vmem:[#allocation2 + $0x100] sm:$0xff] %v1236
        %1301 = vst [vmem:[#allocation2 + $0x108] sm:$0xff] %v1237
        %1302 = vst [vmem:[#allocation2 + $0x110] sm:$0xff] %v1238
        %1303 = vst [vmem:[#allocation2 + $0x118] sm:$0xff] %v1239
        %1304 = vst [vmem:[#allocation2 + $0x120] sm:$0xff] %v1240
        %1305 = vst [vmem:[#allocation2 + $0x128] sm:$0xff] %v1241
        %1306 = vst [vmem:[#allocation2 + $0x130] sm:$0xff] %v1242
        %1307 = vst [vmem:[#allocation2 + $0x138] sm:$0xff] %v1243
        %1308 = vst [vmem:[#allocation2 + $0x140] sm:$0xff] %v1244
        %1309 = vst [vmem:[#allocation2 + $0x148] sm:$0xff] %v1245
        %1310 = vst [vmem:[#allocation2 + $0x150] sm:$0xff] %v1246
        %1311 = vst [vmem:[#allocation2 + $0x158] sm:$0xff] %v1247
        %1312 = vst [vmem:[#allocation2 + $0x160] sm:$0xff] %v1248
        %1313 = vst [vmem:[#allocation2 + $0x168] sm:$0xff] %v1249
        %1314 = vst [vmem:[#allocation2 + $0x170] sm:$0xff] %v1250
        %1315 = vst [vmem:[#allocation2 + $0x178] sm:$0xff] %v1251
        %1316 = vst [vmem:[#allocation2 + $0x180] sm:$0xff] %v1252
        %1317 = vst [vmem:[#allocation2 + $0x188] sm:$0xff] %v1253
        %1318 = vst [vmem:[#allocation2 + $0x190] sm:$0xff] %v1254
        %1319 = vst [vmem:[#allocation2 + $0x198] sm:$0xff] %v1255
        %1320 = vst [vmem:[#allocation2 + $0x1a0] sm:$0xff] %v1256
        %1321 = vst [vmem:[#allocation2 + $0x1a8] sm:$0xff] %v1257
        %1322 = vst [vmem:[#allocation2 + $0x1b0] sm:$0xff] %v1258
        %1323 = vst [vmem:[#allocation2 + $0x1b8] sm:$0xff] %v1259
        %1324 = vst [vmem:[#allocation2 + $0x1c0] sm:$0xff] %v1260
        %1325 = vst [vmem:[#allocation2 + $0x1c8] sm:$0xff] %v1261
        %1326 = vst [vmem:[#allocation2 + $0x1d0] sm:$0xff] %v1262
        %1327 = vst [vmem:[#allocation2 + $0x1d8] sm:$0xff] %v1263
        %1328 = vst [vmem:[#allocation2 + $0x1e0] sm:$0xff] %v1264
        %1329 = vst [vmem:[#allocation2 + $0x1e8] sm:$0xff] %v1265
        %1330 = vst [vmem:[#allocation2 + $0x1f0] sm:$0xff] %v1266
        %1331 = vst [vmem:[#allocation2 + $0x1f8] sm:$0xff] %v1267
        %p1332 = scmp.eq.s32.totalorder %s30, 1
        // Predicated region
        $region49: #{tpu_custom_call.1} parent=31 // pred_check
          %p1333 = pneg %p1332
        $region50: #{tpu_custom_call.1} parent=31 // pred_check_branch
          %1335 = sbr.rel (%p1333) target = $region52
        $region51: #{tpu_custom_call.1} parent=31 // pred_region
          %v1336 = vld [vmem:[#allocation2] sm:$0xff]
          %v1337 = vld [vmem:[#allocation2 + $0x8] sm:$0xff]
          %v1338 = vld [vmem:[#allocation2 + $0x10] sm:$0xff]
          %v1339 = vld [vmem:[#allocation2 + $0x18] sm:$0xff]
          %v1340 = vld [vmem:[#allocation2 + $0x20] sm:$0xff]
          %v1341 = vld [vmem:[#allocation2 + $0x28] sm:$0xff]
          %v1342 = vld [vmem:[#allocation2 + $0x30] sm:$0xff]
          %v1343 = vld [vmem:[#allocation2 + $0x38] sm:$0xff]
          %v1344 = vld [vmem:[#allocation2 + $0x40] sm:$0xff]
          %v1345 = vld [vmem:[#allocation2 + $0x48] sm:$0xff]
          %v1346 = vld [vmem:[#allocation2 + $0x50] sm:$0xff]
          %v1347 = vld [vmem:[#allocation2 + $0x58] sm:$0xff]
          %v1348 = vld [vmem:[#allocation2 + $0x60] sm:$0xff]
          %v1349 = vld [vmem:[#allocation2 + $0x68] sm:$0xff]
          %v1350 = vld [vmem:[#allocation2 + $0x70] sm:$0xff]
          %v1351 = vld [vmem:[#allocation2 + $0x78] sm:$0xff]
          %v1352 = vld [vmem:[#allocation2 + $0x80] sm:$0xff]
          %v1353 = vld [vmem:[#allocation2 + $0x88] sm:$0xff]
          %v1354 = vld [vmem:[#allocation2 + $0x90] sm:$0xff]
          %v1355 = vld [vmem:[#allocation2 + $0x98] sm:$0xff]
          %v1356 = vld [vmem:[#allocation2 + $0xa0] sm:$0xff]
          %v1357 = vld [vmem:[#allocation2 + $0xa8] sm:$0xff]
          %v1358 = vld [vmem:[#allocation2 + $0xb0] sm:$0xff]
          %v1359 = vld [vmem:[#allocation2 + $0xb8] sm:$0xff]
          %v1360 = vld [vmem:[#allocation2 + $0xc0] sm:$0xff]
          %v1361 = vld [vmem:[#allocation2 + $0xc8] sm:$0xff]
          %v1362 = vld [vmem:[#allocation2 + $0xd0] sm:$0xff]
          %v1363 = vld [vmem:[#allocation2 + $0xd8] sm:$0xff]
          %v1364 = vld [vmem:[#allocation2 + $0xe0] sm:$0xff]
          %v1365 = vld [vmem:[#allocation2 + $0xe8] sm:$0xff]
          %v1366 = vld [vmem:[#allocation2 + $0xf0] sm:$0xff]
          %v1367 = vld [vmem:[#allocation2 + $0xf8] sm:$0xff]
          %v1368 = vld [vmem:[#allocation2 + $0x100] sm:$0xff]
          %v1369 = vld [vmem:[#allocation2 + $0x108] sm:$0xff]
          %v1370 = vld [vmem:[#allocation2 + $0x110] sm:$0xff]
          %v1371 = vld [vmem:[#allocation2 + $0x118] sm:$0xff]
          %v1372 = vld [vmem:[#allocation2 + $0x120] sm:$0xff]
          %v1373 = vld [vmem:[#allocation2 + $0x128] sm:$0xff]
          %v1374 = vld [vmem:[#allocation2 + $0x130] sm:$0xff]
          %v1375 = vld [vmem:[#allocation2 + $0x138] sm:$0xff]
          %v1376 = vld [vmem:[#allocation2 + $0x140] sm:$0xff]
          %v1377 = vld [vmem:[#allocation2 + $0x148] sm:$0xff]
          %v1378 = vld [vmem:[#allocation2 + $0x150] sm:$0xff]
          %v1379 = vld [vmem:[#allocation2 + $0x158] sm:$0xff]
          %v1380 = vld [vmem:[#allocation2 + $0x160] sm:$0xff]
          %v1381 = vld [vmem:[#allocation2 + $0x168] sm:$0xff]
          %v1382 = vld [vmem:[#allocation2 + $0x170] sm:$0xff]
          %v1383 = vld [vmem:[#allocation2 + $0x178] sm:$0xff]
          %v1384 = vld [vmem:[#allocation2 + $0x180] sm:$0xff]
          %v1385 = vld [vmem:[#allocation2 + $0x188] sm:$0xff]
          %v1386 = vld [vmem:[#allocation2 + $0x190] sm:$0xff]
          %v1387 = vld [vmem:[#allocation2 + $0x198] sm:$0xff]
          %v1388 = vld [vmem:[#allocation2 + $0x1a0] sm:$0xff]
          %v1389 = vld [vmem:[#allocation2 + $0x1a8] sm:$0xff]
          %v1390 = vld [vmem:[#allocation2 + $0x1b0] sm:$0xff]
          %v1391 = vld [vmem:[#allocation2 + $0x1b8] sm:$0xff]
          %v1392 = vld [vmem:[#allocation2 + $0x1c0] sm:$0xff]
          %v1393 = vld [vmem:[#allocation2 + $0x1c8] sm:$0xff]
          %v1394 = vld [vmem:[#allocation2 + $0x1d0] sm:$0xff]
          %v1395 = vld [vmem:[#allocation2 + $0x1d8] sm:$0xff]
          %v1396 = vld [vmem:[#allocation2 + $0x1e0] sm:$0xff]
          %v1397 = vld [vmem:[#allocation2 + $0x1e8] sm:$0xff]
          %v1398 = vld [vmem:[#allocation2 + $0x1f0] sm:$0xff]
          %v1399 = vld [vmem:[#allocation2 + $0x1f8] sm:$0xff]
          %v1400 = vld [vmem:[%s262] sm:$0x3]
          %v1402 = vlaneseq
          %v1403 = vshrl.u32 %v1402, 7
          %v1404 = vsub.s32 0, %v1403
          %v1405 = vrot.slane %v1400, %v1404
          %v1406 = vlaneseq
          %v1407 = vshrl.u32 %v1406, 7
          %v1408 = vsub.s32 1, %v1407
          %v1409 = vrot.slane %v1400, %v1408
          %v1412 = vadd.f32 %v1336, %v1405
          %v1413 = vadd.f32 %v1337, %v1409
          %v1414 = vadd.f32 %v1338, %v1405
          %v1415 = vadd.f32 %v1339, %v1409
          %v1416 = vadd.f32 %v1340, %v1405
          %v1417 = vadd.f32 %v1341, %v1409
          %v1418 = vadd.f32 %v1342, %v1405
          %v1419 = vadd.f32 %v1343, %v1409
          %v1420 = vadd.f32 %v1344, %v1405
          %v1421 = vadd.f32 %v1345, %v1409
          %v1422 = vadd.f32 %v1346, %v1405
          %v1423 = vadd.f32 %v1347, %v1409
          %v1424 = vadd.f32 %v1348, %v1405
          %v1425 = vadd.f32 %v1349, %v1409
          %v1426 = vadd.f32 %v1350, %v1405
          %v1427 = vadd.f32 %v1351, %v1409
          %v1428 = vadd.f32 %v1352, %v1405
          %v1429 = vadd.f32 %v1353, %v1409
          %v1430 = vadd.f32 %v1354, %v1405
          %v1431 = vadd.f32 %v1355, %v1409
          %v1432 = vadd.f32 %v1356, %v1405
          %v1433 = vadd.f32 %v1357, %v1409
          %v1434 = vadd.f32 %v1358, %v1405
          %v1435 = vadd.f32 %v1359, %v1409
          %v1436 = vadd.f32 %v1360, %v1405
          %v1437 = vadd.f32 %v1361, %v1409
          %v1438 = vadd.f32 %v1362, %v1405
          %v1439 = vadd.f32 %v1363, %v1409
          %v1440 = vadd.f32 %v1364, %v1405
          %v1441 = vadd.f32 %v1365, %v1409
          %v1442 = vadd.f32 %v1366, %v1405
          %v1443 = vadd.f32 %v1367, %v1409
          %v1444 = vadd.f32 %v1368, %v1405
          %v1445 = vadd.f32 %v1369, %v1409
          %v1446 = vadd.f32 %v1370, %v1405
          %v1447 = vadd.f32 %v1371, %v1409
          %v1448 = vadd.f32 %v1372, %v1405
          %v1449 = vadd.f32 %v1373, %v1409
          %v1450 = vadd.f32 %v1374, %v1405
          %v1451 = vadd.f32 %v1375, %v1409
          %v1452 = vadd.f32 %v1376, %v1405
          %v1453 = vadd.f32 %v1377, %v1409
          %v1454 = vadd.f32 %v1378, %v1405
          %v1455 = vadd.f32 %v1379, %v1409
          %v1456 = vadd.f32 %v1380, %v1405
          %v1457 = vadd.f32 %v1381, %v1409
          %v1458 = vadd.f32 %v1382, %v1405
          %v1459 = vadd.f32 %v1383, %v1409
          %v1460 = vadd.f32 %v1384, %v1405
          %v1461 = vadd.f32 %v1385, %v1409
          %v1462 = vadd.f32 %v1386, %v1405
          %v1463 = vadd.f32 %v1387, %v1409
          %v1464 = vadd.f32 %v1388, %v1405
          %v1465 = vadd.f32 %v1389, %v1409
          %v1466 = vadd.f32 %v1390, %v1405
          %v1467 = vadd.f32 %v1391, %v1409
          %v1468 = vadd.f32 %v1392, %v1405
          %v1469 = vadd.f32 %v1393, %v1409
          %v1470 = vadd.f32 %v1394, %v1405
          %v1471 = vadd.f32 %v1395, %v1409
          %v1472 = vadd.f32 %v1396, %v1405
          %v1473 = vadd.f32 %v1397, %v1409
          %v1474 = vadd.f32 %v1398, %v1405
          %v1475 = vadd.f32 %v1399, %v1409
          %1476 = vst [vmem:[%s294] sm:$0xff] %v1412
          %1477 = vst [vmem:[%s294 + $0x8] sm:$0xff] %v1413
          %1478 = vst [vmem:[%s294 + $0x10] sm:$0xff] %v1414
          %1479 = vst [vmem:[%s294 + $0x18] sm:$0xff] %v1415
          %1480 = vst [vmem:[%s294 + $0x20] sm:$0xff] %v1416
          %1481 = vst [vmem:[%s294 + $0x28] sm:$0xff] %v1417
          %1482 = vst [vmem:[%s294 + $0x30] sm:$0xff] %v1418
          %1483 = vst [vmem:[%s294 + $0x38] sm:$0xff] %v1419
          %1484 = vst [vmem:[%s294 + $0x40] sm:$0xff] %v1420
          %1485 = vst [vmem:[%s294 + $0x48] sm:$0xff] %v1421
          %1486 = vst [vmem:[%s294 + $0x50] sm:$0xff] %v1422
          %1487 = vst [vmem:[%s294 + $0x58] sm:$0xff] %v1423
          %1488 = vst [vmem:[%s294 + $0x60] sm:$0xff] %v1424
          %1489 = vst [vmem:[%s294 + $0x68] sm:$0xff] %v1425
          %1490 = vst [vmem:[%s294 + $0x70] sm:$0xff] %v1426
          %1491 = vst [vmem:[%s294 + $0x78] sm:$0xff] %v1427
          %1492 = vst [vmem:[%s294 + $0x80] sm:$0xff] %v1428
          %1493 = vst [vmem:[%s294 + $0x88] sm:$0xff] %v1429
          %1494 = vst [vmem:[%s294 + $0x90] sm:$0xff] %v1430
          %1495 = vst [vmem:[%s294 + $0x98] sm:$0xff] %v1431
          %1496 = vst [vmem:[%s294 + $0xa0] sm:$0xff] %v1432
          %1497 = vst [vmem:[%s294 + $0xa8] sm:$0xff] %v1433
          %1498 = vst [vmem:[%s294 + $0xb0] sm:$0xff] %v1434
          %1499 = vst [vmem:[%s294 + $0xb8] sm:$0xff] %v1435
          %1500 = vst [vmem:[%s294 + $0xc0] sm:$0xff] %v1436
          %1501 = vst [vmem:[%s294 + $0xc8] sm:$0xff] %v1437
          %1502 = vst [vmem:[%s294 + $0xd0] sm:$0xff] %v1438
          %1503 = vst [vmem:[%s294 + $0xd8] sm:$0xff] %v1439
          %1504 = vst [vmem:[%s294 + $0xe0] sm:$0xff] %v1440
          %1505 = vst [vmem:[%s294 + $0xe8] sm:$0xff] %v1441
          %1506 = vst [vmem:[%s294 + $0xf0] sm:$0xff] %v1442
          %1507 = vst [vmem:[%s294 + $0xf8] sm:$0xff] %v1443
          %1508 = vst [vmem:[%s294 + $0x100] sm:$0xff] %v1444
          %1509 = vst [vmem:[%s294 + $0x108] sm:$0xff] %v1445
          %1510 = vst [vmem:[%s294 + $0x110] sm:$0xff] %v1446
          %1511 = vst [vmem:[%s294 + $0x118] sm:$0xff] %v1447
          %1512 = vst [vmem:[%s294 + $0x120] sm:$0xff] %v1448
          %1513 = vst [vmem:[%s294 + $0x128] sm:$0xff] %v1449
          %1514 = vst [vmem:[%s294 + $0x130] sm:$0xff] %v1450
          %1515 = vst [vmem:[%s294 + $0x138] sm:$0xff] %v1451
          %1516 = vst [vmem:[%s294 + $0x140] sm:$0xff] %v1452
          %1517 = vst [vmem:[%s294 + $0x148] sm:$0xff] %v1453
          %1518 = vst [vmem:[%s294 + $0x150] sm:$0xff] %v1454
          %1519 = vst [vmem:[%s294 + $0x158] sm:$0xff] %v1455
          %1520 = vst [vmem:[%s294 + $0x160] sm:$0xff] %v1456
          %1521 = vst [vmem:[%s294 + $0x168] sm:$0xff] %v1457
          %1522 = vst [vmem:[%s294 + $0x170] sm:$0xff] %v1458
          %1523 = vst [vmem:[%s294 + $0x178] sm:$0xff] %v1459
          %1524 = vst [vmem:[%s294 + $0x180] sm:$0xff] %v1460
          %1525 = vst [vmem:[%s294 + $0x188] sm:$0xff] %v1461
          %1526 = vst [vmem:[%s294 + $0x190] sm:$0xff] %v1462
          %1527 = vst [vmem:[%s294 + $0x198] sm:$0xff] %v1463
          %1528 = vst [vmem:[%s294 + $0x1a0] sm:$0xff] %v1464
          %1529 = vst [vmem:[%s294 + $0x1a8] sm:$0xff] %v1465
          %1530 = vst [vmem:[%s294 + $0x1b0] sm:$0xff] %v1466
          %1531 = vst [vmem:[%s294 + $0x1b8] sm:$0xff] %v1467
          %1532 = vst [vmem:[%s294 + $0x1c0] sm:$0xff] %v1468
          %1533 = vst [vmem:[%s294 + $0x1c8] sm:$0xff] %v1469
          %1534 = vst [vmem:[%s294 + $0x1d0] sm:$0xff] %v1470
          %1535 = vst [vmem:[%s294 + $0x1d8] sm:$0xff] %v1471
          %1536 = vst [vmem:[%s294 + $0x1e0] sm:$0xff] %v1472
          %1537 = vst [vmem:[%s294 + $0x1e8] sm:$0xff] %v1473
          %1538 = vst [vmem:[%s294 + $0x1f0] sm:$0xff] %v1474
          %1539 = vst [vmem:[%s294 + $0x1f8] sm:$0xff] %v1475
        $region52: #{tpu_custom_call.1} parent=31 // pred_fallthru
          _
        %s1540 = sand.u32 %s134, 1
        %s1541 = scalar_lea.sflag [#allocation5], %s1540
        %s1542 = sand.u32 %s134, 1
        %s1543 = smul.addr %s1542, 512
        %s1544 = scalar_lea.vmem [#allocation9], %s1543
        // Predicated region
        $region53: #{tpu_custom_call.1} parent=31 // pred_check
          %p1545 = pneg %p144
        $region54: #{tpu_custom_call.1} parent=31 // pred_check_branch
          %1547 = sbr.rel (%p1545) target = $region56
        $region55: #{tpu_custom_call.1} parent=31 // pred_region
          %s1548 = smul.u32 32, %s28
          %s1549 = smul.u32 2, %s29
          %s1551 = ssub.s32 8192, 8192
          %1552 = vsyncadd %s1541, %s1551
          %s1553 = smul.addr %s1548, 4
          %s1554 = sadd.s32 %s1549, %s1553
          %s1555 = smul.addr %s1554, 128
          %s1556 = scalar_lea.hbm %s3, %s1555
          %s1557 = sshll.u32 %s1544, 4
          %s1558 = int_to_ptr.vmem [resolvable:$true] %s1557
          %1563 = dma.vmem_to_hbm [thread:$0]  %s1558, 8192, %s1556, %s1541, 256, 512, 16
        $region56: #{tpu_custom_call.1} parent=31 // pred_fallthru
          _
      $region32: #{tpu_custom_call.1} parent=5 // pred_fallthru
        _
      %p1564 = scmp.le.s32.totalorder 2, %s18
      // Predicated region
      $region57: #{tpu_custom_call.1} parent=5 // pred_check
        %p1565 = pneg %p1564
      $region58: #{tpu_custom_call.1} parent=5 // pred_check_branch
        %1567 = sbr.rel (%p1565) target = $region60
      $region59: #{tpu_custom_call.1} parent=5 // pred_region
        %s1568 = ssub.s32 %s18, 2
        // Predicated region
        $region61: #{tpu_custom_call.1} parent=59 // pred_check
          %p1569 = pneg %p150
        $region62: #{tpu_custom_call.1} parent=59 // pred_check_branch
          %1571 = sbr.rel (%p1569) target = $region64
        $region63: #{tpu_custom_call.1} parent=59 // pred_region
          %s1572 = sand.u32 %s135, 1
          %s1573 = scalar_lea.sflag [#allocation5], %s1572
          %s1574 = sand.u32 %s135, 1
          %s1575 = smul.addr %s1574, 512
          %s1576 = scalar_lea.vmem [#allocation9], %s1575
          %1577 = dma.done %s1573, 8192
        $region64: #{tpu_custom_call.1} parent=59 // pred_fallthru
          _
      $region60: #{tpu_custom_call.1} parent=5 // pred_fallthru
        _
    $region6: #{tpu_custom_call.1} parent=1 // loop_footer
      %s22 = sadd.s32 1, %s18
    $region7: #{tpu_custom_call.1} parent=1 // loop_footer_branch
      %17 = sbr.rel target = $region3
    $region8: #{tpu_custom_call.1} parent=1 // loop_exit
      _
    %1578 = vsyncpa [#allocation4], 1
    %s1579 = scalar_lea.sflag [#allocation4], 1
    %1580 = vsyncpa %s1579, 1
    %1581 = vsyncpa [#allocation7], 1
    %s1582 = scalar_lea.sflag [#allocation7], 1
    %1583 = vsyncpa %s1582, 1
    %1584 = vsyncpa [#allocation5], 1
    %s1585 = scalar_lea.sflag [#allocation5], 1
    %1586 = vsyncpa %s1585, 1

</llo_original>
